<compile_context>
chip_gen: v5e
topology: v5e:2x2
jax: 0.10.0
libtpu: 0.0.40
codegen_flags: <defaults>
</compile_context>

<pallas_src>
import functools
import math

import jax
import jax.numpy as jnp
from jax import lax
from jax.experimental import pallas as pl
from jax.experimental.pallas import tpu as pltpu


# ----------------------------- in-kernel math -------------------------------

def _erf(x):
    # Abramowitz & Stegun 7.1.26, max abs error ~1.5e-7 (fine for f32).
    a1, a2, a3, a4, a5 = 0.254829592, -0.284496736, 1.421413741, -1.453152027, 1.061405429
    p = 0.3275911
    ax = jnp.abs(x)
    t = 1.0 / (1.0 + p * ax)
    poly = ((((a5 * t + a4) * t + a3) * t + a2) * t + a1) * t
    y = 1.0 - poly * jnp.exp(-ax * ax)            # exp goes to the EUP slot
    return jnp.where(x >= 0.0, y, -y)


def _gelu_exact(x):
    # matches torch.nn.GELU() default (erf-based)
    return 0.5 * x * (1.0 + _erf(x * (1.0 / math.sqrt(2.0))))


def _layernorm(x, gamma, beta, eps=1e-5):
    mu = jnp.mean(x, axis=-1, keepdims=True)
    xc = x - mu
    var = jnp.mean(xc * xc, axis=-1, keepdims=True)
    return xc * lax.rsqrt(var + eps) * gamma + beta


# ------------------------------- Pallas kernel ------------------------------

def s4_forward_kernel(
    x_ref,       # (BB*L, d_input)   encoder input rows for this batch block
    we_ref,      # (d_input, H)      encoder weight^T
    be_ref,      # (1, H)            encoder bias
    kshift_ref,  # (8*L, H)          rows r*L:(r+1)*L hold k shifted down by r
    dvec_ref,    # (1, H)            S4D skip parameter D
    wc1_ref,     # (H, H)            1x1-conv value weight^T   (bf16 or f32)
    wc2_ref,     # (H, H)            1x1-conv gate  weight^T   (bf16 or f32)
    bc1_ref,     # (1, H)
    bc2_ref,     # (1, H)
    gamma_ref,   # (1, H)            LayerNorm weight
    beta_ref,    # (1, H)            LayerNorm bias
    wd_ref,      # (H, DO_PAD)       decoder weight^T, zero-padded lanes
    bd_ref,      # (1, DO_PAD)       decoder bias, -1e30 in padded lanes
    out_ref,     # (1, BB, DO_PAD)   class probabilities (padded lanes -> 0)
    u_ref,       # scratch (BB, L, H)   encoder output (residual / conv input)
    pool_ref,    # scratch (BB, H)      running sum over time of the LN output
    *, seq_len, d_model, block_b,
):
    L, H, BB = seq_len, d_model, block_b
    n_tiles = L // 8

    # ---- encoder: (BB*L, d_input) @ (d_input, H) ----------------------------
    enc = jnp.dot(x_ref[...], we_ref[...],
                  preferred_element_type=jnp.float32) + be_ref[...]
    u_ref[...] = enc.reshape(BB, L, H)
    pool_ref[...] = jnp.zeros((BB, H), jnp.float32)

    dvec = dvec_ref[...]                            # (1, H)
    gamma = gamma_ref[...]
    beta = beta_ref[...]
    bc1 = bc1_ref[...]
    bc2 = bc2_ref[...]
    mm_dtype = wc1_ref.dtype                        # bf16 MXU operands (f32 acc)

    # ---- S4D causal conv (== FFT conv truncated to L) + fused epilogue ------
    # y[b, 8i+j, h] = sum_{c<=i} sum_{r=0..7} u[b, 8c+r, h] * k[8(i-c)+j-r, h]
    # kshift row r*L + p holds k[p-r] (0 for p<r)  ->  every read is an aligned
    # (8,H) slab; causality inside the diagonal chunk comes from the zero rows.
    def tile_body(i, carry):
        lo = pl.multiple_of(i * 8, 8)               # output rows lo..lo+7

        def chunk_body(c, acc):
            mo = pl.multiple_of(c * 8, 8)           # input rows mo..mo+7
            parts = []
            for r in range(8):                      # statically unrolled taps
                u_row = u_ref[:, pl.ds(mo + r, 1), :]              # (BB, 1, H)
                ks = pl.multiple_of(lo - mo + r * L, 8)
                k_slab = kshift_ref[pl.ds(ks, 8), :]               # (8, H) aligned
                parts.append(u_row * k_slab)                       # (BB, 8, H)
            while len(parts) > 1:                   # tree-sum for ILP
                parts = [parts[j] + parts[j + 1] for j in range(0, len(parts), 2)]
            return acc + parts[0]

        # causality across chunks: c > i would only hit zero kernel rows -> skip
        acc = lax.fori_loop(0, i + 1, chunk_body,
                            jnp.zeros((BB, 8, H), jnp.float32))

        u_tile = u_ref[:, pl.ds(lo, 8), :]                         # (BB, 8, H)
        y_tile = _gelu_exact(acc + u_tile * dvec)                  # D-skip + GELU

        # fused 1x1 conv + GLU + residual + post-norm LayerNorm + pool accum
        y2 = y_tile.reshape(BB * 8, H).astype(mm_dtype)
        z1 = jnp.dot(y2, wc1_ref[...], preferred_element_type=jnp.float32) + bc1
        z2 = jnp.dot(y2, wc2_ref[...], preferred_element_type=jnp.float32) + bc2
        glu = z1 * jax.nn.sigmoid(z2)
        xr = _layernorm(glu + u_tile.reshape(BB * 8, H), gamma, beta)
        pool_ref[...] += xr.reshape(BB, 8, H).sum(axis=1)
        return carry

    lax.fori_loop(0, n_tiles, tile_body, 0)

    # ---- mean pool over L, decoder, softmax (f32; -1e30 pads stay finite) ---
    pooled = pool_ref[...] * jnp.float32(1.0 / L)                  # (BB, H)
    logits = jnp.dot(pooled, wd_ref[...],
                     preferred_element_type=jnp.float32) + bd_ref[...]
    m = jnp.max(logits, axis=-1, keepdims=True)
    e = jnp.exp(logits - m)                  # padded lanes: exp(-1e30 - m) -> 0
    out_ref[...] = (e / jnp.sum(e, axis=-1, keepdims=True))[None, :, :]


# ------------------------------ JAX glue -------------------------------------

def compute_ssm_kernel(log_dt, c_re, c_im, log_A_real, A_imag, L):
    """Materialise the S4D convolution kernel K (H, L) — plain JAX (complex)."""
    dt = jnp.exp(log_dt)                                       # (H,)
    C = c_re + 1j * c_im                                       # (H, N/2)
    A = -jnp.exp(log_A_real) + 1j * A_imag                     # (H, N/2)
    dtA = A * dt[:, None]                                      # (H, N/2)
    K = dtA[:, :, None] * jnp.arange(L)                        # (H, N/2, L)
    C2 = C * (jnp.exp(dtA) - 1.0) / A
    k = 2.0 * jnp.einsum('hn,hnl->hl', C2, jnp.exp(K)).real    # (H, L)
    return k.astype(jnp.float32)


def _pick_block_b(B, L, H, d_input, max_block_b=8, scratch_budget=24 << 20):
    """Batch rows per grid step: fits VMEM (v7x!), keeps >=2 grid steps, divides B."""
    per_row = L * H * 4 + 2 * L * d_input * 4 + H * 4     # u scratch + x block(2x)
    bb = max(1, min(B, max_block_b, max(1, scratch_budget // per_row)))
    if B > 1 and -(-B // bb) < 2:       # >= 2 grid steps -> both v7x TCs get work
        bb = -(-B // 2)
    while bb > 1 and B % bb != 0:       # padded batch rows would pay full conv cost
        bb -= 1
    return bb


def s4_model_forward(x, params, *, d_model, d_output, max_block_b=8, mxu_bf16=True):
    B, d_input, L = x.shape
    H = d_model
    assert L % 8 == 0 and L >= 8, "sequence length must be a multiple of 8"
    # NOTE: for production configs prefer H % 128 == 0 (lane-dense VPU/MXU work).

    BB = _pick_block_b(B, L, H, d_input, max_block_b)
    G = -(-B // BB)
    B_pad = G * BB
    DO_PAD = ((d_output + 127) // 128) * 128          # lane-dense decoder output

    # ---- parameter setup (plain JAX): SSM kernel, shifted-kernel table ------
    k = compute_ssm_kernel(params["log_dt"], params["C_re"], params["C_im"],
                           params["log_A_real"], params["A_imag"], L)
    k_t = k.T                                         # (L, H) time-major
    # 8 tap-shifted copies of k (rows r*L+p = k[p-r], zero for p<r): every conv
    # read in the kernel becomes an aligned (8,H) slab; causality is baked in.
    kshift = jnp.concatenate(
        [jnp.pad(k_t, ((r, 0), (0, 0)))[:L] for r in range(8)], axis=0)  # (8L, H)

    mm_dtype = jnp.bfloat16 if mxu_bf16 else jnp.float32
    wc1 = params["Wc1_T"].astype(mm_dtype)            # (H, H)
    wc2 = params["Wc2_T"].astype(mm_dtype)            # (H, H)

    wd_pad = jnp.zeros((H, DO_PAD), jnp.float32).at[:, :d_output].set(params["Wd_T"])
    bd_pad = jnp.full((1, DO_PAD), -1e30, jnp.float32).at[:, :d_output].set(params["bd"])

    # ---- input: NCL -> (B*L, d_input) rows (natural MXU layout) -------------
    xt = jnp.transpose(x, (0, 2, 1)).astype(jnp.float32)       # (B, L, d_input)
    if B_pad != B:
        xt = jnp.pad(xt, ((0, B_pad - B), (0, 0), (0, 0)))
    x2 = xt.reshape(B_pad * L, d_input)

    kernel = functools.partial(s4_forward_kernel, seq_len=L, d_model=H, block_b=BB)

    def fixed(shape):
        return pl.BlockSpec(shape, lambda b, _n=len(shape): (0,) * _n)

    # Explicit VMEM budget (v5e default scoped limit is 16 MiB; v7x physical is
    # 64 MiB, so cap there — BB sizing above keeps per-block scratch well under).
    vmem_need = (
        2 * BB * L * d_input * 4            # x block (double-buffered)
        + 8 * L * H * 4                     # shifted SSM kernel table (resident)
        + 2 * H * H * (2 if mxu_bf16 else 4)
        + d_input * H * 4 + 8 * H * 4       # encoder weight + small vectors
        + (H + 1) * DO_PAD * 4              # decoder weight + bias
        + BB * L * H * 4 + BB * H * 4       # scratch: u + pool accumulator
        + 2 * BB * DO_PAD * 4               # output block
    )
    vmem_limit = int(min(max(2 * vmem_need, 32 << 20), 64 << 20))

    out3 = pl.pallas_call(
        kernel,
        out_shape=jax.ShapeDtypeStruct((G, BB, DO_PAD), jnp.float32),
        grid=(G,),
        in_specs=[
            pl.BlockSpec((BB * L, d_input), lambda b: (b, 0)),
            fixed((d_input, H)),      # encoder weight^T
            fixed((1, H)),            # encoder bias
            fixed((8 * L, H)),        # shifted SSM kernel table
            fixed((1, H)),            # D
            fixed((H, H)),            # conv1x1 value weight^T
            fixed((H, H)),            # conv1x1 gate  weight^T
            fixed((1, H)),            # conv1x1 value bias
            fixed((1, H)),            # conv1x1 gate  bias
            fixed((1, H)),            # LayerNorm gamma
            fixed((1, H)),            # LayerNorm beta
            fixed((H, DO_PAD)),       # decoder weight^T (lane-padded)
            fixed((1, DO_PAD)),       # decoder bias     (padded lanes = -1e30)
        ],
        out_specs=pl.BlockSpec((1, BB, DO_PAD), lambda b: (b, 0, 0)),
        scratch_shapes=[
            pltpu.VMEM((BB, L, H), jnp.float32),       # encoder output / residual
            pltpu.VMEM((BB, H), jnp.float32),          # running pooled sum
        ],
        compiler_params=pltpu.CompilerParams(
            dimension_semantics=("parallel",),         # batch blocks independent
            vmem_limit_bytes=vmem_limit,
        ),
    )(x2, params["We_T"], params["be"], kshift, params["D"], wc1, wc2,
      params["bc1"], params["bc2"], params["gamma"], params["beta"],
      wd_pad, bd_pad)

    return out3.reshape(B_pad, DO_PAD)[:B, :d_output]


def init_params(key, *, d_input, d_model, d_state, d_output,
                dt_min=0.001, dt_max=0.1):
    H, N2 = d_model, d_state // 2
    ks = jax.random.split(key, 8)

    log_dt = (jax.random.uniform(ks[0], (H,), jnp.float32)
              * (math.log(dt_max) - math.log(dt_min)) + math.log(dt_min))
    c_scale = 1.0 / math.sqrt(2.0)
    C_re = jax.random.normal(ks[1], (H, N2), jnp.float32) * c_scale
    C_im = jax.random.normal(ks[2], (H, N2), jnp.float32) * c_scale
    log_A_real = jnp.log(0.5 * jnp.ones((H, N2), jnp.float32))
    A_imag = math.pi * jnp.broadcast_to(jnp.arange(N2, dtype=jnp.float32), (H, N2))
    D = jax.random.normal(ks[3], (1, H), jnp.float32)

    def uni(k, shape):
        return jax.random.uniform(k, shape, jnp.float32, -0.1, 0.1)

    We = uni(ks[4], (H, d_input))            # nn.Linear(d_input, d_model).weight
    Wc = uni(ks[5], (2 * H, H))              # nn.Conv1d(H, 2H, 1).weight[..., 0]
    Wd = uni(ks[6], (d_output, H))           # nn.Linear(d_model, d_output).weight

    return dict(
        log_dt=log_dt, C_re=C_re, C_im=C_im, log_A_real=log_A_real,
        A_imag=A_imag, D=D,
        We_T=We.T, be=jnp.zeros((1, H), jnp.float32),
        Wc1_T=Wc[:H, :].T, bc1=jnp.zeros((1, H), jnp.float32),
        Wc2_T=Wc[H:, :].T, bc2=jnp.zeros((1, H), jnp.float32),
        gamma=jnp.ones((1, H), jnp.float32), beta=jnp.zeros((1, H), jnp.float32),
        Wd_T=Wd.T, bd=jnp.zeros((1, d_output), jnp.float32),
    )


if __name__ == "__main__":
    B, d_input, L = 2, 4, 16
    d_model, d_state, d_output = 64, 64, 2   # n_layers = 1 (module default d_model)

    key = jax.random.PRNGKey(0)
    kp, kx = jax.random.split(key)
    params = init_params(kp, d_input=d_input, d_model=d_model,
                         d_state=d_state, d_output=d_output)
    x = jax.random.normal(kx, (B, d_input, L), jnp.float32)

    out = s4_model_forward(x, params, d_model=d_model, d_output=d_output)
    out = jax.block_until_ready(out)
    assert out.shape == (B, d_output)
    # TODO(synk): dropout layers are identities (eval-mode semantics); the FFT
    # conv is realised as an equivalent tiled direct causal convolution.
    print("KERNEL_OK")
</pallas_src>

<mosaic_0001>
module attributes {stable_mosaic.version = 11 : i64} {
  func.func @s4_forward_kernel(%arg0: i32, %arg1: memref<16x4xf32, #tpu.memory_space<vmem>>, %arg2: memref<4x64xf32, #tpu.memory_space<vmem>>, %arg3: memref<1x64xf32, #tpu.memory_space<vmem>>, %arg4: memref<128x64xf32, #tpu.memory_space<vmem>>, %arg5: memref<1x64xf32, #tpu.memory_space<vmem>>, %arg6: memref<64x64xbf16, #tpu.memory_space<vmem>>, %arg7: memref<64x64xbf16, #tpu.memory_space<vmem>>, %arg8: memref<1x64xf32, #tpu.memory_space<vmem>>, %arg9: memref<1x64xf32, #tpu.memory_space<vmem>>, %arg10: memref<1x64xf32, #tpu.memory_space<vmem>>, %arg11: memref<1x64xf32, #tpu.memory_space<vmem>>, %arg12: memref<64x128xf32, #tpu.memory_space<vmem>>, %arg13: memref<1x128xf32, #tpu.memory_space<vmem>>, %arg14: memref<1x1x128xf32, #tpu.memory_space<vmem>>, %arg15: memref<1x16x64xf32, #tpu.memory_space<vmem>>, %arg16: memref<1x64xf32, #tpu.memory_space<vmem>>) attributes {dimension_semantics = [#tpu.dimension_semantics<parallel>], iteration_bounds = array<i64: 2>, scalar_prefetch = 0 : i64, scratch_operands = 2 : i64, tpu.core_type = #tpu.core_type<tc>, window_params = [{transform_indices = @transform_0, window_bounds = array<i64: 16, 4>}, {pipeline_mode = #tpu.pipeline_mode<synchronous>, transform_indices = @transform_1, window_bounds = array<i64: 4, 64>}, {pipeline_mode = #tpu.pipeline_mode<synchronous>, transform_indices = @transform_2, window_bounds = array<i64: 1, 64>}, {pipeline_mode = #tpu.pipeline_mode<synchronous>, transform_indices = @transform_3, window_bounds = array<i64: 128, 64>}, {pipeline_mode = #tpu.pipeline_mode<synchronous>, transform_indices = @transform_4, window_bounds = array<i64: 1, 64>}, {pipeline_mode = #tpu.pipeline_mode<synchronous>, transform_indices = @transform_5, window_bounds = array<i64: 64, 64>}, {pipeline_mode = #tpu.pipeline_mode<synchronous>, transform_indices = @transform_6, window_bounds = array<i64: 64, 64>}, {pipeline_mode = #tpu.pipeline_mode<synchronous>, transform_indices = @transform_7, window_bounds = array<i64: 1, 64>}, {pipeline_mode = #tpu.pipeline_mode<synchronous>, transform_indices = @transform_8, window_bounds = array<i64: 1, 64>}, {pipeline_mode = #tpu.pipeline_mode<synchronous>, transform_indices = @transform_9, window_bounds = array<i64: 1, 64>}, {pipeline_mode = #tpu.pipeline_mode<synchronous>, transform_indices = @transform_10, window_bounds = array<i64: 1, 64>}, {pipeline_mode = #tpu.pipeline_mode<synchronous>, transform_indices = @transform_11, window_bounds = array<i64: 64, 128>}, {pipeline_mode = #tpu.pipeline_mode<synchronous>, transform_indices = @transform_12, window_bounds = array<i64: 1, 128>}, {transform_indices = @transform_13, window_bounds = array<i64: 1, 1, 128>}]} {
    %c0 = arith.constant 0 : index
    %c0_0 = arith.constant 0 : index
    %0 = vector.load %arg1[%c0, %c0_0] : memref<16x4xf32, #tpu.memory_space<vmem>>, vector<16x4xf32>
    %c0_1 = arith.constant 0 : index
    %c0_2 = arith.constant 0 : index
    %1 = vector.load %arg2[%c0_1, %c0_2] : memref<4x64xf32, #tpu.memory_space<vmem>>, vector<4x64xf32>
    %cst = arith.constant dense<0.000000e+00> : vector<16x64xf32>
    %2 = tpu.matmul %0, %1, %cst {dimension_numbers = #tpu.dot_dimension_numbers<[1], [0], [0], [1], [0, 0, 1, 1], [], []>} : vector<16x4xf32>, vector<4x64xf32>, vector<16x64xf32> -> vector<16x64xf32>
    %c0_3 = arith.constant 0 : index
    %c0_4 = arith.constant 0 : index
    %3 = vector.load %arg3[%c0_3, %c0_4] : memref<1x64xf32, #tpu.memory_space<vmem>>, vector<1x64xf32>
    %4 = vector.broadcast %3 : vector<1x64xf32> to vector<16x64xf32>
    %5 = arith.addf %2, %4 : vector<16x64xf32>
    %6 = vector.shape_cast %5 : vector<16x64xf32> to vector<1x16x64xf32>
    %c0_5 = arith.constant 0 : index
    %c0_6 = arith.constant 0 : index
    %c0_7 = arith.constant 0 : index
    %7 = vector.load %arg15[%c0_5, %c0_6, %c0_7] : memref<1x16x64xf32, #tpu.memory_space<vmem>>, vector<1x16x64xf32>
    tpu.vector_store %arg15[%c0_5, %c0_6, %c0_7], %6 {strides = array<i32>} : memref<1x16x64xf32, #tpu.memory_space<vmem>>, vector<1x16x64xf32>,
    %cst_8 = arith.constant 0.000000e+00 : f32
    %8 = vector.broadcast %cst_8 : f32 to vector<1x64xf32>
    %c0_9 = arith.constant 0 : index
    %c0_10 = arith.constant 0 : index
    %9 = vector.load %arg16[%c0_9, %c0_10] : memref<1x64xf32, #tpu.memory_space<vmem>>, vector<1x64xf32>
    tpu.vector_store %arg16[%c0_9, %c0_10], %8 {strides = array<i32>} : memref<1x64xf32, #tpu.memory_space<vmem>>, vector<1x64xf32>,
    %c0_11 = arith.constant 0 : index
    %c0_12 = arith.constant 0 : index
    %10 = vector.load %arg5[%c0_11, %c0_12] : memref<1x64xf32, #tpu.memory_space<vmem>>, vector<1x64xf32>
    %c0_13 = arith.constant 0 : index
    %c0_14 = arith.constant 0 : index
    %11 = vector.load %arg10[%c0_13, %c0_14] : memref<1x64xf32, #tpu.memory_space<vmem>>, vector<1x64xf32>
    %c0_15 = arith.constant 0 : index
    %c0_16 = arith.constant 0 : index
    %12 = vector.load %arg11[%c0_15, %c0_16] : memref<1x64xf32, #tpu.memory_space<vmem>>, vector<1x64xf32>
    %c0_17 = arith.constant 0 : index
    %c0_18 = arith.constant 0 : index
    %13 = vector.load %arg8[%c0_17, %c0_18] : memref<1x64xf32, #tpu.memory_space<vmem>>, vector<1x64xf32>
    %c0_19 = arith.constant 0 : index
    %c0_20 = arith.constant 0 : index
    %14 = vector.load %arg9[%c0_19, %c0_20] : memref<1x64xf32, #tpu.memory_space<vmem>>, vector<1x64xf32>
    %c0_i32 = arith.constant 0 : i32
    %c2_i32 = arith.constant 2 : i32
    %15 = arith.addi %c0_i32, %c2_i32 : i32
    %c1_i32 = arith.constant 1 : i32
    scf.for %arg17 = %c0_i32 to %15 step %c1_i32  : i32 {
      %c8_i32 = arith.constant 8 : i32
      %34 = arith.muli %arg17, %c8_i32 : i32
      %35 = tpu.assume_multiple %34, 8 : i32
      %c1_i32_35 = arith.constant 1 : i32
      %36 = arith.addi %arg17, %c1_i32_35 : i32
      %cst_36 = arith.constant 0.000000e+00 : f32
      %37 = vector.broadcast %cst_36 : f32 to vector<1x8x64xf32>
      %c0_i32_37 = arith.constant 0 : i32
      %38 = arith.subi %36, %c0_i32_37 : i32
      %39 = arith.addi %c0_i32_37, %38 : i32
      %c1_i32_38 = arith.constant 1 : i32
      %40 = scf.for %arg18 = %c0_i32_37 to %39 step %c1_i32_38 iter_args(%arg19 = %37) -> (vector<1x8x64xf32>)  : i32 {
        %c8_i32_73 = arith.constant 8 : i32
        %130 = arith.muli %arg18, %c8_i32_73 : i32
        %131 = tpu.assume_multiple %130, 8 : i32
        %c0_i32_74 = arith.constant 0 : i32
        %132 = arith.addi %131, %c0_i32_74 : i32
        %c0_75 = arith.constant 0 : index
        %133 = arith.index_cast %132 : i32 to index
        %c0_76 = arith.constant 0 : index
        %134 = vector.load %arg15[%c0_75, %133, %c0_76] : memref<1x16x64xf32, #tpu.memory_space<vmem>>, vector<1x1x64xf32>
        %135 = arith.subi %35, %131 : i32
        %c0_i32_77 = arith.constant 0 : i32
        %136 = arith.addi %135, %c0_i32_77 : i32
        %137 = tpu.assume_multiple %136, 8 : i32
        %138 = arith.index_cast %137 : i32 to index
        %c0_78 = arith.constant 0 : index
        %139 = vector.load %arg4[%138, %c0_78] : memref<128x64xf32, #tpu.memory_space<vmem>>, vector<8x64xf32>
        %140 = vector.shape_cast %139 : vector<8x64xf32> to vector<1x8x64xf32>
        %141 = vector.broadcast %134 : vector<1x1x64xf32> to vector<1x8x64xf32>
        %142 = arith.mulf %141, %140 : vector<1x8x64xf32>
        %c1_i32_79 = arith.constant 1 : i32
        %143 = arith.addi %131, %c1_i32_79 : i32
        %c0_80 = arith.constant 0 : index
        %144 = arith.index_cast %143 : i32 to index
        %c0_81 = arith.constant 0 : index
        %145 = vector.load %arg15[%c0_80, %144, %c0_81] : memref<1x16x64xf32, #tpu.memory_space<vmem>>, vector<1x1x64xf32>
        %146 = arith.subi %35, %131 : i32
        %c16_i32 = arith.constant 16 : i32
        %147 = arith.addi %146, %c16_i32 : i32
        %148 = tpu.assume_multiple %147, 8 : i32
        %149 = arith.index_cast %148 : i32 to index
        %c0_82 = arith.constant 0 : index
        %150 = vector.load %arg4[%149, %c0_82] : memref<128x64xf32, #tpu.memory_space<vmem>>, vector<8x64xf32>
        %151 = vector.shape_cast %150 : vector<8x64xf32> to vector<1x8x64xf32>
        %152 = vector.broadcast %145 : vector<1x1x64xf32> to vector<1x8x64xf32>
        %153 = arith.mulf %152, %151 : vector<1x8x64xf32>
        %c2_i32_83 = arith.constant 2 : i32
        %154 = arith.addi %131, %c2_i32_83 : i32
        %c0_84 = arith.constant 0 : index
        %155 = arith.index_cast %154 : i32 to index
        %c0_85 = arith.constant 0 : index
        %156 = vector.load %arg15[%c0_84, %155, %c0_85] : memref<1x16x64xf32, #tpu.memory_space<vmem>>, vector<1x1x64xf32>
        %157 = arith.subi %35, %131 : i32
        %c32_i32 = arith.constant 32 : i32
        %158 = arith.addi %157, %c32_i32 : i32
        %159 = tpu.assume_multiple %158, 8 : i32
        %160 = arith.index_cast %159 : i32 to index
        %c0_86 = arith.constant 0 : index
        %161 = vector.load %arg4[%160, %c0_86] : memref<128x64xf32, #tpu.memory_space<vmem>>, vector<8x64xf32>
        %162 = vector.shape_cast %161 : vector<8x64xf32> to vector<1x8x64xf32>
        %163 = vector.broadcast %156 : vector<1x1x64xf32> to vector<1x8x64xf32>
        %164 = arith.mulf %163, %162 : vector<1x8x64xf32>
        %c3_i32 = arith.constant 3 : i32
        %165 = arith.addi %131, %c3_i32 : i32
        %c0_87 = arith.constant 0 : index
        %166 = arith.index_cast %165 : i32 to index
        %c0_88 = arith.constant 0 : index
        %167 = vector.load %arg15[%c0_87, %166, %c0_88] : memref<1x16x64xf32, #tpu.memory_space<vmem>>, vector<1x1x64xf32>
        %168 = arith.subi %35, %131 : i32
        %c48_i32 = arith.constant 48 : i32
        %169 = arith.addi %168, %c48_i32 : i32
        %170 = tpu.assume_multiple %169, 8 : i32
        %171 = arith.index_cast %170 : i32 to index
        %c0_89 = arith.constant 0 : index
        %172 = vector.load %arg4[%171, %c0_89] : memref<128x64xf32, #tpu.memory_space<vmem>>, vector<8x64xf32>
        %173 = vector.shape_cast %172 : vector<8x64xf32> to vector<1x8x64xf32>
        %174 = vector.broadcast %167 : vector<1x1x64xf32> to vector<1x8x64xf32>
        %175 = arith.mulf %174, %173 : vector<1x8x64xf32>
        %c4_i32 = arith.constant 4 : i32
        %176 = arith.addi %131, %c4_i32 : i32
        %c0_90 = arith.constant 0 : index
        %177 = arith.index_cast %176 : i32 to index
        %c0_91 = arith.constant 0 : index
        %178 = vector.load %arg15[%c0_90, %177, %c0_91] : memref<1x16x64xf32, #tpu.memory_space<vmem>>, vector<1x1x64xf32>
        %179 = arith.subi %35, %131 : i32
        %c64_i32 = arith.constant 64 : i32
        %180 = arith.addi %179, %c64_i32 : i32
        %181 = tpu.assume_multiple %180, 8 : i32
        %182 = arith.index_cast %181 : i32 to index
        %c0_92 = arith.constant 0 : index
        %183 = vector.load %arg4[%182, %c0_92] : memref<128x64xf32, #tpu.memory_space<vmem>>, vector<8x64xf32>
        %184 = vector.shape_cast %183 : vector<8x64xf32> to vector<1x8x64xf32>
        %185 = vector.broadcast %178 : vector<1x1x64xf32> to vector<1x8x64xf32>
        %186 = arith.mulf %185, %184 : vector<1x8x64xf32>
        %c5_i32 = arith.constant 5 : i32
        %187 = arith.addi %131, %c5_i32 : i32
        %c0_93 = arith.constant 0 : index
        %188 = arith.index_cast %187 : i32 to index
        %c0_94 = arith.constant 0 : index
        %189 = vector.load %arg15[%c0_93, %188, %c0_94] : memref<1x16x64xf32, #tpu.memory_space<vmem>>, vector<1x1x64xf32>
        %190 = arith.subi %35, %131 : i32
        %c80_i32 = arith.constant 80 : i32
        %191 = arith.addi %190, %c80_i32 : i32
        %192 = tpu.assume_multiple %191, 8 : i32
        %193 = arith.index_cast %192 : i32 to index
        %c0_95 = arith.constant 0 : index
        %194 = vector.load %arg4[%193, %c0_95] : memref<128x64xf32, #tpu.memory_space<vmem>>, vector<8x64xf32>
        %195 = vector.shape_cast %194 : vector<8x64xf32> to vector<1x8x64xf32>
        %196 = vector.broadcast %189 : vector<1x1x64xf32> to vector<1x8x64xf32>
        %197 = arith.mulf %196, %195 : vector<1x8x64xf32>
        %c6_i32 = arith.constant 6 : i32
        %198 = arith.addi %131, %c6_i32 : i32
        %c0_96 = arith.constant 0 : index
        %199 = arith.index_cast %198 : i32 to index
        %c0_97 = arith.constant 0 : index
        %200 = vector.load %arg15[%c0_96, %199, %c0_97] : memref<1x16x64xf32, #tpu.memory_space<vmem>>, vector<1x1x64xf32>
        %201 = arith.subi %35, %131 : i32
        %c96_i32 = arith.constant 96 : i32
        %202 = arith.addi %201, %c96_i32 : i32
        %203 = tpu.assume_multiple %202, 8 : i32
        %204 = arith.index_cast %203 : i32 to index
        %c0_98 = arith.constant 0 : index
        %205 = vector.load %arg4[%204, %c0_98] : memref<128x64xf32, #tpu.memory_space<vmem>>, vector<8x64xf32>
        %206 = vector.shape_cast %205 : vector<8x64xf32> to vector<1x8x64xf32>
        %207 = vector.broadcast %200 : vector<1x1x64xf32> to vector<1x8x64xf32>
        %208 = arith.mulf %207, %206 : vector<1x8x64xf32>
        %c7_i32 = arith.constant 7 : i32
        %209 = arith.addi %131, %c7_i32 : i32
        %c0_99 = arith.constant 0 : index
        %210 = arith.index_cast %209 : i32 to index
        %c0_100 = arith.constant 0 : index
        %211 = vector.load %arg15[%c0_99, %210, %c0_100] : memref<1x16x64xf32, #tpu.memory_space<vmem>>, vector<1x1x64xf32>
        %212 = arith.subi %35, %131 : i32
        %c112_i32 = arith.constant 112 : i32
        %213 = arith.addi %212, %c112_i32 : i32
        %214 = tpu.assume_multiple %213, 8 : i32
        %215 = arith.index_cast %214 : i32 to index
        %c0_101 = arith.constant 0 : index
        %216 = vector.load %arg4[%215, %c0_101] : memref<128x64xf32, #tpu.memory_space<vmem>>, vector<8x64xf32>
        %217 = vector.shape_cast %216 : vector<8x64xf32> to vector<1x8x64xf32>
        %218 = vector.broadcast %211 : vector<1x1x64xf32> to vector<1x8x64xf32>
        %219 = arith.mulf %218, %217 : vector<1x8x64xf32>
        %220 = arith.addf %142, %153 : vector<1x8x64xf32>
        %221 = arith.addf %164, %175 : vector<1x8x64xf32>
        %222 = arith.addf %186, %197 : vector<1x8x64xf32>
        %223 = arith.addf %208, %219 : vector<1x8x64xf32>
        %224 = arith.addf %220, %221 : vector<1x8x64xf32>
        %225 = arith.addf %222, %223 : vector<1x8x64xf32>
        %226 = arith.addf %224, %225 : vector<1x8x64xf32>
        %227 = arith.addf %arg19, %226 : vector<1x8x64xf32>
        scf.yield %227 : vector<1x8x64xf32>
      }
      %c0_39 = arith.constant 0 : index
      %41 = arith.index_cast %35 : i32 to index
      %c0_40 = arith.constant 0 : index
      %42 = vector.load %arg15[%c0_39, %41, %c0_40] : memref<1x16x64xf32, #tpu.memory_space<vmem>>, vector<1x8x64xf32>
      %43 = vector.shape_cast %10 : vector<1x64xf32> to vector<1x1x64xf32>
      %44 = vector.broadcast %43 : vector<1x1x64xf32> to vector<1x8x64xf32>
      %45 = arith.mulf %42, %44 : vector<1x8x64xf32>
      %46 = arith.addf %40, %45 : vector<1x8x64xf32>
      %cst_41 = arith.constant 5.000000e-01 : f32
      %47 = vector.broadcast %cst_41 : f32 to vector<1x8x64xf32>
      %48 = arith.mulf %47, %46 : vector<1x8x64xf32>
      %cst_42 = arith.constant 0.707106769 : f32
      %49 = vector.broadcast %cst_42 : f32 to vector<1x8x64xf32>
      %50 = arith.mulf %46, %49 : vector<1x8x64xf32>
      %51 = math.absf %50 : vector<1x8x64xf32>
      %cst_43 = arith.constant 0.327591091 : f32
      %52 = vector.broadcast %cst_43 : f32 to vector<1x8x64xf32>
      %53 = arith.mulf %52, %51 : vector<1x8x64xf32>
      %cst_44 = arith.constant 1.000000e+00 : f32
      %54 = vector.broadcast %cst_44 : f32 to vector<1x8x64xf32>
      %55 = arith.addf %54, %53 : vector<1x8x64xf32>
      %cst_45 = arith.constant 1.000000e+00 : f32
      %56 = vector.broadcast %cst_45 : f32 to vector<1x8x64xf32>
      %57 = arith.divf %56, %55 : vector<1x8x64xf32>
      %cst_46 = arith.constant 1.06140542 : f32
      %58 = vector.broadcast %cst_46 : f32 to vector<1x8x64xf32>
      %59 = arith.mulf %58, %57 : vector<1x8x64xf32>
      %cst_47 = arith.constant -1.45315206 : f32
      %60 = vector.broadcast %cst_47 : f32 to vector<1x8x64xf32>
      %61 = arith.addf %59, %60 : vector<1x8x64xf32>
      %62 = arith.mulf %61, %57 : vector<1x8x64xf32>
      %cst_48 = arith.constant 1.42141378 : f32
      %63 = vector.broadcast %cst_48 : f32 to vector<1x8x64xf32>
      %64 = arith.addf %62, %63 : vector<1x8x64xf32>
      %65 = arith.mulf %64, %57 : vector<1x8x64xf32>
      %cst_49 = arith.constant -0.284496725 : f32
      %66 = vector.broadcast %cst_49 : f32 to vector<1x8x64xf32>
      %67 = arith.addf %65, %66 : vector<1x8x64xf32>
      %68 = arith.mulf %67, %57 : vector<1x8x64xf32>
      %cst_50 = arith.constant 0.254829586 : f32
      %69 = vector.broadcast %cst_50 : f32 to vector<1x8x64xf32>
      %70 = arith.addf %68, %69 : vector<1x8x64xf32>
      %71 = arith.mulf %70, %57 : vector<1x8x64xf32>
      %cst_51 = arith.constant 0.000000e+00 : f32
      %72 = vector.broadcast %cst_51 : f32 to vector<1x8x64xf32>
      %73 = arith.subf %72, %51 : vector<1x8x64xf32>
      %74 = arith.mulf %73, %51 : vector<1x8x64xf32>
      %75 = math.exp %74 : vector<1x8x64xf32>
      %76 = arith.mulf %71, %75 : vector<1x8x64xf32>
      %cst_52 = arith.constant 1.000000e+00 : f32
      %77 = vector.broadcast %cst_52 : f32 to vector<1x8x64xf32>
      %78 = arith.subf %77, %76 : vector<1x8x64xf32>
      %cst_53 = arith.constant 0.000000e+00 : f32
      %79 = vector.broadcast %cst_53 : f32 to vector<1x8x64xf32>
      %80 = arith.cmpf oge, %50, %79 : vector<1x8x64xf32>
      %cst_54 = arith.constant 0.000000e+00 : f32
      %81 = vector.broadcast %cst_54 : f32 to vector<1x8x64xf32>
      %82 = arith.subf %81, %78 : vector<1x8x64xf32>
      %83 = arith.select %80, %78, %82 : vector<1x8x64xi1>, vector<1x8x64xf32>
      %cst_55 = arith.constant 1.000000e+00 : f32
      %84 = vector.broadcast %cst_55 : f32 to vector<1x8x64xf32>
      %85 = arith.addf %84, %83 : vector<1x8x64xf32>
      %86 = arith.mulf %48, %85 : vector<1x8x64xf32>
      %87 = vector.shape_cast %86 : vector<1x8x64xf32> to vector<8x64xf32>
      %88 = arith.truncf %87 : vector<8x64xf32> to vector<8x64xbf16>
      %c0_56 = arith.constant 0 : index
      %c0_57 = arith.constant 0 : index
      %89 = vector.load %arg6[%c0_56, %c0_57] : memref<64x64xbf16, #tpu.memory_space<vmem>>, vector<64x64xbf16>
      %cst_58 = arith.constant dense<0.000000e+00> : vector<8x64xf32>
      %90 = tpu.matmul %88, %89, %cst_58 {dimension_numbers = #tpu.dot_dimension_numbers<[1], [0], [0], [1], [0, 0, 1, 1], [], []>} : vector<8x64xbf16>, vector<64x64xbf16>, vector<8x64xf32> -> vector<8x64xf32>
      %91 = vector.broadcast %13 : vector<1x64xf32> to vector<8x64xf32>
      %92 = arith.addf %90, %91 : vector<8x64xf32>
      %c0_59 = arith.constant 0 : index
      %c0_60 = arith.constant 0 : index
      %93 = vector.load %arg7[%c0_59, %c0_60] : memref<64x64xbf16, #tpu.memory_space<vmem>>, vector<64x64xbf16>
      %cst_61 = arith.constant dense<0.000000e+00> : vector<8x64xf32>
      %94 = tpu.matmul %88, %93, %cst_61 {dimension_numbers = #tpu.dot_dimension_numbers<[1], [0], [0], [1], [0, 0, 1, 1], [], []>} : vector<8x64xbf16>, vector<64x64xbf16>, vector<8x64xf32> -> vector<8x64xf32>
      %95 = vector.broadcast %14 : vector<1x64xf32> to vector<8x64xf32>
      %96 = arith.addf %94, %95 : vector<8x64xf32>
      %97 = arith.negf %96 : vector<8x64xf32>
      %98 = math.exp %97 : vector<8x64xf32>
      %cst_62 = arith.constant 1.000000e+00 : f32
      %99 = vector.broadcast %cst_62 : f32 to vector<8x64xf32>
      %100 = arith.addf %99, %98 : vector<8x64xf32>
      %101 = arith.divf %99, %100 : vector<8x64xf32>
      %102 = arith.mulf %92, %101 : vector<8x64xf32>
      %103 = vector.shape_cast %42 : vector<1x8x64xf32> to vector<8x64xf32>
      %104 = arith.addf %102, %103 : vector<8x64xf32>
      %cst_63 = arith.constant dense<0.000000e+00> : vector<8xf32>
      %105 = vector.multi_reduction <add>, %104, %cst_63 [1] : vector<8x64xf32> to vector<8xf32>
      %106 = vector.shape_cast %105 : vector<8xf32> to vector<8x1xf32>
      %cst_64 = arith.constant 6.400000e+01 : f32
      %107 = vector.broadcast %cst_64 : f32 to vector<8x1xf32>
      %108 = arith.divf %106, %107 : vector<8x1xf32>
      %109 = vector.broadcast %108 : vector<8x1xf32> to vector<8x64xf32>
      %110 = arith.subf %104, %109 : vector<8x64xf32>
      %111 = arith.mulf %110, %110 : vector<8x64xf32>
      %cst_65 = arith.constant dense<0.000000e+00> : vector<8xf32>
      %112 = vector.multi_reduction <add>, %111, %cst_65 [1] : vector<8x64xf32> to vector<8xf32>
      %113 = vector.shape_cast %112 : vector<8xf32> to vector<8x1xf32>
      %cst_66 = arith.constant 6.400000e+01 : f32
      %114 = vector.broadcast %cst_66 : f32 to vector<8x1xf32>
      %115 = arith.divf %113, %114 : vector<8x1xf32>
      %cst_67 = arith.constant 9.99999974E-6 : f32
      %116 = vector.broadcast %cst_67 : f32 to vector<8x1xf32>
      %117 = arith.addf %115, %116 : vector<8x1xf32>
      %118 = math.rsqrt %117 : vector<8x1xf32>
      %119 = vector.broadcast %118 : vector<8x1xf32> to vector<8x64xf32>
      %120 = arith.mulf %110, %119 : vector<8x64xf32>
      %121 = vector.broadcast %11 : vector<1x64xf32> to vector<8x64xf32>
      %122 = arith.mulf %120, %121 : vector<8x64xf32>
      %123 = vector.broadcast %12 : vector<1x64xf32> to vector<8x64xf32>
      %124 = arith.addf %122, %123 : vector<8x64xf32>
      %c0_68 = arith.constant 0 : index
      %c0_69 = arith.constant 0 : index
      %125 = vector.load %arg16[%c0_68, %c0_69] : memref<1x64xf32, #tpu.memory_space<vmem>>, vector<1x64xf32>
      %126 = vector.shape_cast %124 : vector<8x64xf32> to vector<1x8x64xf32>
      %cst_70 = arith.constant dense<0.000000e+00> : vector<1x64xf32>
      %127 = vector.multi_reduction <add>, %126, %cst_70 [1] : vector<1x8x64xf32> to vector<1x64xf32>
      %128 = arith.addf %125, %127 : vector<1x64xf32>
      %c0_71 = arith.constant 0 : index
      %c0_72 = arith.constant 0 : index
      %129 = vector.load %arg16[%c0_71, %c0_72] : memref<1x64xf32, #tpu.memory_space<vmem>>, vector<1x64xf32>
      tpu.vector_store %arg16[%c0_71, %c0_72], %128 {strides = array<i32>} : memref<1x64xf32, #tpu.memory_space<vmem>>, vector<1x64xf32>,
    }
    %c2_i32_21 = arith.constant 2 : i32
    %c0_22 = arith.constant 0 : index
    %c0_23 = arith.constant 0 : index
    %16 = vector.load %arg16[%c0_22, %c0_23] : memref<1x64xf32, #tpu.memory_space<vmem>>, vector<1x64xf32>
    %cst_24 = arith.constant 6.250000e-02 : f32
    %17 = vector.broadcast %cst_24 : f32 to vector<1x64xf32>
    %18 = arith.mulf %16, %17 : vector<1x64xf32>
    %c0_25 = arith.constant 0 : index
    %c0_26 = arith.constant 0 : index
    %19 = vector.load %arg12[%c0_25, %c0_26] : memref<64x128xf32, #tpu.memory_space<vmem>>, vector<64x128xf32>
    %cst_27 = arith.constant dense<0.000000e+00> : vector<1x128xf32>
    %20 = tpu.matmul %18, %19, %cst_27 {dimension_numbers = #tpu.dot_dimension_numbers<[1], [0], [0], [1], [0, 0, 1, 1], [], []>} : vector<1x64xf32>, vector<64x128xf32>, vector<1x128xf32> -> vector<1x128xf32>
    %c0_28 = arith.constant 0 : index
    %c0_29 = arith.constant 0 : index
    %21 = vector.load %arg13[%c0_28, %c0_29] : memref<1x128xf32, #tpu.memory_space<vmem>>, vector<1x128xf32>
    %22 = arith.addf %20, %21 : vector<1x128xf32>
    %cst_30 = arith.constant dense<0xFF800000> : vector<1xf32>
    %23 = vector.multi_reduction <maximumf>, %22, %cst_30 [1] : vector<1x128xf32> to vector<1xf32>
    %24 = vector.shape_cast %23 : vector<1xf32> to vector<1x1xf32>
    %25 = vector.broadcast %24 : vector<1x1xf32> to vector<1x128xf32>
    %26 = arith.subf %22, %25 : vector<1x128xf32>
    %27 = math.exp %26 : vector<1x128xf32>
    %cst_31 = arith.constant dense<0.000000e+00> : vector<1xf32>
    %28 = vector.multi_reduction <add>, %27, %cst_31 [1] : vector<1x128xf32> to vector<1xf32>
    %29 = vector.shape_cast %28 : vector<1xf32> to vector<1x1xf32>
    %30 = vector.broadcast %29 : vector<1x1xf32> to vector<1x128xf32>
    %31 = arith.divf %27, %30 : vector<1x128xf32>
    %32 = vector.shape_cast %31 : vector<1x128xf32> to vector<1x1x128xf32>
    %c0_32 = arith.constant 0 : index
    %c0_33 = arith.constant 0 : index
    %c0_34 = arith.constant 0 : index
    %33 = vector.load %arg14[%c0_32, %c0_33, %c0_34] : memref<1x1x128xf32, #tpu.memory_space<vmem>>, vector<1x1x128xf32>
    tpu.vector_store %arg14[%c0_32, %c0_33, %c0_34], %32 {strides = array<i32>} : memref<1x1x128xf32, #tpu.memory_space<vmem>>, vector<1x1x128xf32>,
    return
  }
  func.func @transform_0(%arg0: i32) -> (i32, i32) {
    %c0_i32 = arith.constant 0 : i32
    %c0_i32_0 = arith.constant 0 : i32
    return %arg0, %c0_i32 : i32, i32
  }
  func.func @transform_1(%arg0: i32) -> (i32, i32) {
    %c0_i32 = arith.constant 0 : i32
    %c0_i32_0 = arith.constant 0 : i32
    %c0_i32_1 = arith.constant 0 : i32
    return %c0_i32, %c0_i32_0 : i32, i32
  }
  func.func @transform_2(%arg0: i32) -> (i32, i32) {
    %c0_i32 = arith.constant 0 : i32
    %c0_i32_0 = arith.constant 0 : i32
    %c0_i32_1 = arith.constant 0 : i32
    return %c0_i32, %c0_i32_0 : i32, i32
  }
  func.func @transform_3(%arg0: i32) -> (i32, i32) {
    %c0_i32 = arith.constant 0 : i32
    %c0_i32_0 = arith.constant 0 : i32
    %c0_i32_1 = arith.constant 0 : i32
    return %c0_i32, %c0_i32_0 : i32, i32
  }
  func.func @transform_4(%arg0: i32) -> (i32, i32) {
    %c0_i32 = arith.constant 0 : i32
    %c0_i32_0 = arith.constant 0 : i32
    %c0_i32_1 = arith.constant 0 : i32
    return %c0_i32, %c0_i32_0 : i32, i32
  }
  func.func @transform_5(%arg0: i32) -> (i32, i32) {
    %c0_i32 = arith.constant 0 : i32
    %c0_i32_0 = arith.constant 0 : i32
    %c0_i32_1 = arith.constant 0 : i32
    return %c0_i32, %c0_i32_0 : i32, i32
  }
  func.func @transform_6(%arg0: i32) -> (i32, i32) {
    %c0_i32 = arith.constant 0 : i32
    %c0_i32_0 = arith.constant 0 : i32
    %c0_i32_1 = arith.constant 0 : i32
    return %c0_i32, %c0_i32_0 : i32, i32
  }
  func.func @transform_7(%arg0: i32) -> (i32, i32) {
    %c0_i32 = arith.constant 0 : i32
    %c0_i32_0 = arith.constant 0 : i32
    %c0_i32_1 = arith.constant 0 : i32
    return %c0_i32, %c0_i32_0 : i32, i32
  }
  func.func @transform_8(%arg0: i32) -> (i32, i32) {
    %c0_i32 = arith.constant 0 : i32
    %c0_i32_0 = arith.constant 0 : i32
    %c0_i32_1 = arith.constant 0 : i32
    return %c0_i32, %c0_i32_0 : i32, i32
  }
  func.func @transform_9(%arg0: i32) -> (i32, i32) {
    %c0_i32 = arith.constant 0 : i32
    %c0_i32_0 = arith.constant 0 : i32
    %c0_i32_1 = arith.constant 0 : i32
    return %c0_i32, %c0_i32_0 : i32, i32
  }
  func.func @transform_10(%arg0: i32) -> (i32, i32) {
    %c0_i32 = arith.constant 0 : i32
    %c0_i32_0 = arith.constant 0 : i32
    %c0_i32_1 = arith.constant 0 : i32
    return %c0_i32, %c0_i32_0 : i32, i32
  }
  func.func @transform_11(%arg0: i32) -> (i32, i32) {
    %c0_i32 = arith.constant 0 : i32
    %c0_i32_0 = arith.constant 0 : i32
    %c0_i32_1 = arith.constant 0 : i32
    return %c0_i32, %c0_i32_0 : i32, i32
  }
  func.func @transform_12(%arg0: i32) -> (i32, i32) {
    %c0_i32 = arith.constant 0 : i32
    %c0_i32_0 = arith.constant 0 : i32
    %c0_i32_1 = arith.constant 0 : i32
    return %c0_i32, %c0_i32_0 : i32, i32
  }
  func.func @transform_13(%arg0: i32) -> (i32, i32, i32) {
    %c0_i32 = arith.constant 0 : i32
    %c0_i32_0 = arith.constant 0 : i32
    %c0_i32_1 = arith.constant 0 : i32
    return %arg0, %c0_i32, %c0_i32_0 : i32, i32, i32
  }
}

</mosaic_0001>

<llo_original>
// kernel: tpu_custom_call.1
$region0: #{tpu_custom_call.1}
  #allocation0 [shape = 'u32[]', space=smem, size = 0x4, offset = 0x4, fixed_abs, tag = 'smem constant byte address 0x4 - core index']
  #allocation1 [shape = 'u32[72,128]{1,0:T(1,128)}', space=vmem, size = 0x9000, scoped, tag = 'internal scratch']
  #allocation2 [shape = 'f32[1,16,64]{2,1,0:T(8,128)}', space=vmem, size = 0x2000, scoped, tag = 'scratch operand']
  #allocation3 [shape = 'f32[1,64]{1,0:T(1,128)}', space=vmem, size = 0x200, scoped, tag = 'scratch operand']
  %s0 = inlined_call_operand.vmem [shape: f32[32,4], index: 0, kind: input, shape index: {}]
  %s1 = inlined_call_operand.vmem [shape: f32[4,64], index: 1, kind: input, shape index: {}]
  %s2 = inlined_call_operand.vmem [shape: f32[1,64], index: 2, kind: input, shape index: {}]
  %s3 = inlined_call_operand.vmem [shape: f32[128,64], index: 3, kind: input, shape index: {}]
  %s4 = inlined_call_operand.vmem [shape: f32[1,64], index: 4, kind: input, shape index: {}]
  %s5 = inlined_call_operand.vmem [shape: bf16[64,64], index: 5, kind: input, shape index: {}]
  %s6 = inlined_call_operand.vmem [shape: bf16[64,64], index: 6, kind: input, shape index: {}]
  %s7 = inlined_call_operand.vmem [shape: f32[1,64], index: 7, kind: input, shape index: {}]
  %s8 = inlined_call_operand.vmem [shape: f32[1,64], index: 8, kind: input, shape index: {}]
  %s9 = inlined_call_operand.vmem [shape: f32[1,64], index: 9, kind: input, shape index: {}]
  %s10 = inlined_call_operand.vmem [shape: f32[1,64], index: 10, kind: input, shape index: {}]
  %s11 = inlined_call_operand.vmem [shape: f32[64,128], index: 11, kind: input, shape index: {}]
  %s12 = inlined_call_operand.vmem [shape: f32[1,128], index: 12, kind: input, shape index: {}]
  %s13 = inlined_call_operand.hbm [shape: f32[2,1,128], index: 13, kind: output, shape index: {}]
  %s14 = sld [smem:[#allocation0]]
  $region99: #{tpu_custom_call.1} parent=0
    _
  %s16 = ssub.s32 1, %s14
  %s17 = scalar_select 0, %s16, %s14
  $region1: #{tpu_custom_call.1} parent=0
    #allocation4 [shape = 'u8[1024]{0}', space=vmem, size = 0x400, scoped, tag = 'output window, operand 0']
    #allocation5 [shape = 's32[2]{0}', space=sflag, size = 0x8, scoped, tag = 'scoped memory for tpu_custom_call.1']
    %18 = vsyncpa [#allocation5], 0
    %s19 = scalar_lea.sflag [#allocation5], 1
    %20 = vsyncpa %s19, 0
    loop: start=0, step=1, limit=4
    $region2: #{tpu_custom_call.1} parent=1 // loop_pre_header
      _
    $region3: #{tpu_custom_call.1} parent=1 // loop_header
      %s22 = sphi 0, %s26
      %p23 = scmp.ge.s32.totalorder %s22, 4
      %s32 = sphi 0, %s34
      %s35 = sphi 0, %s32
      %s36 = sphi 0, %s35
      %s52 = sphi 0, %s36
      %s56 = sphi 0, %s56
      %s58 = sphi 0, %s56
      %s59 = sphi 0, %s58
      %s73 = sphi 0, %s59
      %s77 = sphi 0, %s77
      %s79 = sphi 0, %s77
      %s80 = sphi 0, %s79
      %s94 = sphi 0, %s80
      %s98 = sphi 0, %s98
      %s100 = sphi 0, %s98
      %s101 = sphi 0, %s100
      %s115 = sphi 0, %s101
      %s119 = sphi 0, %s119
      %s121 = sphi 0, %s119
      %s122 = sphi 0, %s121
      %s136 = sphi 0, %s122
      %s140 = sphi 0, %s140
      %s142 = sphi 0, %s140
      %s143 = sphi 0, %s142
      %s157 = sphi 0, %s143
      %s161 = sphi 0, %s161
      %s163 = sphi 0, %s161
      %s164 = sphi 0, %s163
      %s178 = sphi 0, %s164
      %s182 = sphi 0, %s182
      %s184 = sphi 0, %s182
      %s185 = sphi 0, %s184
      %s199 = sphi 0, %s185
      %s203 = sphi 0, %s203
      %s205 = sphi 0, %s203
      %s206 = sphi 0, %s205
      %s220 = sphi 0, %s206
      %s224 = sphi 0, %s224
      %s226 = sphi 0, %s224
      %s227 = sphi 0, %s226
      %s241 = sphi 0, %s227
      %s245 = sphi 0, %s245
      %s247 = sphi 0, %s245
      %s248 = sphi 0, %s247
      %s262 = sphi 0, %s248
      %s266 = sphi 0, %s266
      %s268 = sphi 0, %s266
      %s269 = sphi 0, %s268
      %s283 = sphi 0, %s269
      %s287 = sphi 0, %s287
      %s289 = sphi 0, %s287
      %s290 = sphi 0, %s289
      %s304 = sphi 0, %s290
      %s310 = sphi 0, %s312
      %s313 = sphi 0, %s310
      %s314 = sphi 0, %s313
      %s330 = sphi 0, %s314
    $region4: #{tpu_custom_call.1} parent=1 // loop_header_branch
      %25 = sbr.rel (%p23) target = $region8
    $region5: #{tpu_custom_call.1} parent=1 // loop_body
      %s27 = ssub.s32 %s22, 1
      %s28 = ssub.s32 %s22, 2
      %s29 = sadd.s32 %s22, 1
      %s30 = ssub.s32 %s22, %s29
      %p31 = scmp.eq.s32.totalorder %s30, 0
      %s33 = sadd.s32 %s32, 1
      %s34 = scalar_select %p31, %s32, %s33
      %p37 = pneg %p31
      %p38 = scmp.eq.s32.totalorder %s22, 1
      %p39 = por %p37, %p38
      %p40 = scmp.ne.s32.totalorder %s32, %s35
      %p41 = scmp.eq.s32.totalorder %s22, 0
      %p42 = por %p40, %p41
      %p43 = scmp.ne.s32.totalorder %s32, %s35
      %p44 = scmp.eq.s32.totalorder %s27, 1
      %p45 = por %p43, %p44
      %p46 = scmp.ne.s32.totalorder %s35, %s36
      %p47 = scmp.eq.s32.totalorder %s27, 0
      %p48 = por %p46, %p47
      %p49 = scmp.ne.s32.totalorder %s35, %s36
      %p50 = scmp.eq.s32.totalorder %s28, 1
      %p51 = por %p49, %p50
      %p53 = scmp.ne.s32.totalorder %s36, %s52
      %p54 = scmp.eq.s32.totalorder %s28, 0
      %p55 = por %p53, %p54
      %s57 = sadd.s32 %s56, 1
      %p60 = scmp.eq.s32.totalorder %s22, 1
      %p61 = scmp.ne.s32.totalorder %s56, %s58
      %p62 = scmp.eq.s32.totalorder %s22, 0
      %p63 = por %p61, %p62
      %p64 = scmp.ne.s32.totalorder %s56, %s58
      %p65 = scmp.eq.s32.totalorder %s27, 1
      %p66 = por %p64, %p65
      %p67 = scmp.ne.s32.totalorder %s58, %s59
      %p68 = scmp.eq.s32.totalorder %s27, 0
      %p69 = por %p67, %p68
      %p70 = scmp.ne.s32.totalorder %s58, %s59
      %p71 = scmp.eq.s32.totalorder %s28, 1
      %p72 = por %p70, %p71
      %p74 = scmp.ne.s32.totalorder %s59, %s73
      %p75 = scmp.eq.s32.totalorder %s28, 0
      %p76 = por %p74, %p75
      %s78 = sadd.s32 %s77, 1
      %p81 = scmp.eq.s32.totalorder %s22, 1
      %p82 = scmp.ne.s32.totalorder %s77, %s79
      %p83 = scmp.eq.s32.totalorder %s22, 0
      %p84 = por %p82, %p83
      %p85 = scmp.ne.s32.totalorder %s77, %s79
      %p86 = scmp.eq.s32.totalorder %s27, 1
      %p87 = por %p85, %p86
      %p88 = scmp.ne.s32.totalorder %s79, %s80
      %p89 = scmp.eq.s32.totalorder %s27, 0
      %p90 = por %p88, %p89
      %p91 = scmp.ne.s32.totalorder %s79, %s80
      %p92 = scmp.eq.s32.totalorder %s28, 1
      %p93 = por %p91, %p92
      %p95 = scmp.ne.s32.totalorder %s80, %s94
      %p96 = scmp.eq.s32.totalorder %s28, 0
      %p97 = por %p95, %p96
      %s99 = sadd.s32 %s98, 1
      %p102 = scmp.eq.s32.totalorder %s22, 1
      %p103 = scmp.ne.s32.totalorder %s98, %s100
      %p104 = scmp.eq.s32.totalorder %s22, 0
      %p105 = por %p103, %p104
      %p106 = scmp.ne.s32.totalorder %s98, %s100
      %p107 = scmp.eq.s32.totalorder %s27, 1
      %p108 = por %p106, %p107
      %p109 = scmp.ne.s32.totalorder %s100, %s101
      %p110 = scmp.eq.s32.totalorder %s27, 0
      %p111 = por %p109, %p110
      %p112 = scmp.ne.s32.totalorder %s100, %s101
      %p113 = scmp.eq.s32.totalorder %s28, 1
      %p114 = por %p112, %p113
      %p116 = scmp.ne.s32.totalorder %s101, %s115
      %p117 = scmp.eq.s32.totalorder %s28, 0
      %p118 = por %p116, %p117
      %s120 = sadd.s32 %s119, 1
      %p123 = scmp.eq.s32.totalorder %s22, 1
      %p124 = scmp.ne.s32.totalorder %s119, %s121
      %p125 = scmp.eq.s32.totalorder %s22, 0
      %p126 = por %p124, %p125
      %p127 = scmp.ne.s32.totalorder %s119, %s121
      %p128 = scmp.eq.s32.totalorder %s27, 1
      %p129 = por %p127, %p128
      %p130 = scmp.ne.s32.totalorder %s121, %s122
      %p131 = scmp.eq.s32.totalorder %s27, 0
      %p132 = por %p130, %p131
      %p133 = scmp.ne.s32.totalorder %s121, %s122
      %p134 = scmp.eq.s32.totalorder %s28, 1
      %p135 = por %p133, %p134
      %p137 = scmp.ne.s32.totalorder %s122, %s136
      %p138 = scmp.eq.s32.totalorder %s28, 0
      %p139 = por %p137, %p138
      %s141 = sadd.s32 %s140, 1
      %p144 = scmp.eq.s32.totalorder %s22, 1
      %p145 = scmp.ne.s32.totalorder %s140, %s142
      %p146 = scmp.eq.s32.totalorder %s22, 0
      %p147 = por %p145, %p146
      %p148 = scmp.ne.s32.totalorder %s140, %s142
      %p149 = scmp.eq.s32.totalorder %s27, 1
      %p150 = por %p148, %p149
      %p151 = scmp.ne.s32.totalorder %s142, %s143
      %p152 = scmp.eq.s32.totalorder %s27, 0
      %p153 = por %p151, %p152
      %p154 = scmp.ne.s32.totalorder %s142, %s143
      %p155 = scmp.eq.s32.totalorder %s28, 1
      %p156 = por %p154, %p155
      %p158 = scmp.ne.s32.totalorder %s143, %s157
      %p159 = scmp.eq.s32.totalorder %s28, 0
      %p160 = por %p158, %p159
      %s162 = sadd.s32 %s161, 1
      %p165 = scmp.eq.s32.totalorder %s22, 1
      %p166 = scmp.ne.s32.totalorder %s161, %s163
      %p167 = scmp.eq.s32.totalorder %s22, 0
      %p168 = por %p166, %p167
      %p169 = scmp.ne.s32.totalorder %s161, %s163
      %p170 = scmp.eq.s32.totalorder %s27, 1
      %p171 = por %p169, %p170
      %p172 = scmp.ne.s32.totalorder %s163, %s164
      %p173 = scmp.eq.s32.totalorder %s27, 0
      %p174 = por %p172, %p173
      %p175 = scmp.ne.s32.totalorder %s163, %s164
      %p176 = scmp.eq.s32.totalorder %s28, 1
      %p177 = por %p175, %p176
      %p179 = scmp.ne.s32.totalorder %s164, %s178
      %p180 = scmp.eq.s32.totalorder %s28, 0
      %p181 = por %p179, %p180
      %s183 = sadd.s32 %s182, 1
      %p186 = scmp.eq.s32.totalorder %s22, 1
      %p187 = scmp.ne.s32.totalorder %s182, %s184
      %p188 = scmp.eq.s32.totalorder %s22, 0
      %p189 = por %p187, %p188
      %p190 = scmp.ne.s32.totalorder %s182, %s184
      %p191 = scmp.eq.s32.totalorder %s27, 1
      %p192 = por %p190, %p191
      %p193 = scmp.ne.s32.totalorder %s184, %s185
      %p194 = scmp.eq.s32.totalorder %s27, 0
      %p195 = por %p193, %p194
      %p196 = scmp.ne.s32.totalorder %s184, %s185
      %p197 = scmp.eq.s32.totalorder %s28, 1
      %p198 = por %p196, %p197
      %p200 = scmp.ne.s32.totalorder %s185, %s199
      %p201 = scmp.eq.s32.totalorder %s28, 0
      %p202 = por %p200, %p201
      %s204 = sadd.s32 %s203, 1
      %p207 = scmp.eq.s32.totalorder %s22, 1
      %p208 = scmp.ne.s32.totalorder %s203, %s205
      %p209 = scmp.eq.s32.totalorder %s22, 0
      %p210 = por %p208, %p209
      %p211 = scmp.ne.s32.totalorder %s203, %s205
      %p212 = scmp.eq.s32.totalorder %s27, 1
      %p213 = por %p211, %p212
      %p214 = scmp.ne.s32.totalorder %s205, %s206
      %p215 = scmp.eq.s32.totalorder %s27, 0
      %p216 = por %p214, %p215
      %p217 = scmp.ne.s32.totalorder %s205, %s206
      %p218 = scmp.eq.s32.totalorder %s28, 1
      %p219 = por %p217, %p218
      %p221 = scmp.ne.s32.totalorder %s206, %s220
      %p222 = scmp.eq.s32.totalorder %s28, 0
      %p223 = por %p221, %p222
      %s225 = sadd.s32 %s224, 1
      %p228 = scmp.eq.s32.totalorder %s22, 1
      %p229 = scmp.ne.s32.totalorder %s224, %s226
      %p230 = scmp.eq.s32.totalorder %s22, 0
      %p231 = por %p229, %p230
      %p232 = scmp.ne.s32.totalorder %s224, %s226
      %p233 = scmp.eq.s32.totalorder %s27, 1
      %p234 = por %p232, %p233
      %p235 = scmp.ne.s32.totalorder %s226, %s227
      %p236 = scmp.eq.s32.totalorder %s27, 0
      %p237 = por %p235, %p236
      %p238 = scmp.ne.s32.totalorder %s226, %s227
      %p239 = scmp.eq.s32.totalorder %s28, 1
      %p240 = por %p238, %p239
      %p242 = scmp.ne.s32.totalorder %s227, %s241
      %p243 = scmp.eq.s32.totalorder %s28, 0
      %p244 = por %p242, %p243
      %s246 = sadd.s32 %s245, 1
      %p249 = scmp.eq.s32.totalorder %s22, 1
      %p250 = scmp.ne.s32.totalorder %s245, %s247
      %p251 = scmp.eq.s32.totalorder %s22, 0
      %p252 = por %p250, %p251
      %p253 = scmp.ne.s32.totalorder %s245, %s247
      %p254 = scmp.eq.s32.totalorder %s27, 1
      %p255 = por %p253, %p254
      %p256 = scmp.ne.s32.totalorder %s247, %s248
      %p257 = scmp.eq.s32.totalorder %s27, 0
      %p258 = por %p256, %p257
      %p259 = scmp.ne.s32.totalorder %s247, %s248
      %p260 = scmp.eq.s32.totalorder %s28, 1
      %p261 = por %p259, %p260
      %p263 = scmp.ne.s32.totalorder %s248, %s262
      %p264 = scmp.eq.s32.totalorder %s28, 0
      %p265 = por %p263, %p264
      %s267 = sadd.s32 %s266, 1
      %p270 = scmp.eq.s32.totalorder %s22, 1
      %p271 = scmp.ne.s32.totalorder %s266, %s268
      %p272 = scmp.eq.s32.totalorder %s22, 0
      %p273 = por %p271, %p272
      %p274 = scmp.ne.s32.totalorder %s266, %s268
      %p275 = scmp.eq.s32.totalorder %s27, 1
      %p276 = por %p274, %p275
      %p277 = scmp.ne.s32.totalorder %s268, %s269
      %p278 = scmp.eq.s32.totalorder %s27, 0
      %p279 = por %p277, %p278
      %p280 = scmp.ne.s32.totalorder %s268, %s269
      %p281 = scmp.eq.s32.totalorder %s28, 1
      %p282 = por %p280, %p281
      %p284 = scmp.ne.s32.totalorder %s269, %s283
      %p285 = scmp.eq.s32.totalorder %s28, 0
      %p286 = por %p284, %p285
      %s288 = sadd.s32 %s287, 1
      %p291 = scmp.eq.s32.totalorder %s22, 1
      %p292 = scmp.ne.s32.totalorder %s287, %s289
      %p293 = scmp.eq.s32.totalorder %s22, 0
      %p294 = por %p292, %p293
      %p295 = scmp.ne.s32.totalorder %s287, %s289
      %p296 = scmp.eq.s32.totalorder %s27, 1
      %p297 = por %p295, %p296
      %p298 = scmp.ne.s32.totalorder %s289, %s290
      %p299 = scmp.eq.s32.totalorder %s27, 0
      %p300 = por %p298, %p299
      %p301 = scmp.ne.s32.totalorder %s289, %s290
      %p302 = scmp.eq.s32.totalorder %s28, 1
      %p303 = por %p301, %p302
      %p305 = scmp.ne.s32.totalorder %s290, %s304
      %p306 = scmp.eq.s32.totalorder %s28, 0
      %p307 = por %p305, %p306
      %s308 = ssub.s32 %s22, %s29
      %p309 = scmp.eq.s32.totalorder %s308, 0
      %s311 = sadd.s32 %s310, 1
      %s312 = scalar_select %p309, %s310, %s311
      %p315 = pneg %p309
      %p316 = scmp.eq.s32.totalorder %s22, 1
      %p317 = por %p315, %p316
      %p318 = scmp.ne.s32.totalorder %s310, %s313
      %p319 = scmp.eq.s32.totalorder %s22, 0
      %p320 = por %p318, %p319
      %p321 = scmp.ne.s32.totalorder %s310, %s313
      %p322 = scmp.eq.s32.totalorder %s27, 1
      %p323 = por %p321, %p322
      %p324 = scmp.ne.s32.totalorder %s313, %s314
      %p325 = scmp.eq.s32.totalorder %s27, 0
      %p326 = por %p324, %p325
      %p327 = scmp.ne.s32.totalorder %s313, %s314
      %p328 = scmp.eq.s32.totalorder %s28, 1
      %p329 = por %p327, %p328
      %p331 = scmp.ne.s32.totalorder %s314, %s330
      %p332 = scmp.eq.s32.totalorder %s28, 0
      %p333 = por %p331, %p332
      %p334 = scmp.le.s32.totalorder 1, %s22
      %p335 = scmp.lt.s32.totalorder %s22, 3
      %p336 = pnand %p334, %p335
      %p337 = pneg %p336
      // Predicated region
      $region9: #{tpu_custom_call.1} parent=5 // pred_check
        _
      $region10: #{tpu_custom_call.1} parent=5 // pred_check_branch
        %339 = sbr.rel (%p336) target = $region12
      $region11: #{tpu_custom_call.1} parent=5 // pred_region
        %s340 = ssub.s32 %s22, 1
        // Predicated region
        $region13: #{tpu_custom_call.1} parent=11 // pred_check
          %p341 = pneg %p69
        $region14: #{tpu_custom_call.1} parent=11 // pred_check_branch
          %343 = sbr.rel (%p341) target = $region16
        $region15: #{tpu_custom_call.1} parent=11 // pred_region
          _
        $region16: #{tpu_custom_call.1} parent=11 // pred_fallthru
          _
        // Predicated region
        $region17: #{tpu_custom_call.1} parent=11 // pred_check
          %p344 = pneg %p90
        $region18: #{tpu_custom_call.1} parent=11 // pred_check_branch
          %346 = sbr.rel (%p344) target = $region20
        $region19: #{tpu_custom_call.1} parent=11 // pred_region
          _
        $region20: #{tpu_custom_call.1} parent=11 // pred_fallthru
          _
        // Predicated region
        $region21: #{tpu_custom_call.1} parent=11 // pred_check
          %p347 = pneg %p111
        $region22: #{tpu_custom_call.1} parent=11 // pred_check_branch
          %349 = sbr.rel (%p347) target = $region24
        $region23: #{tpu_custom_call.1} parent=11 // pred_region
          _
        $region24: #{tpu_custom_call.1} parent=11 // pred_fallthru
          _
        // Predicated region
        $region25: #{tpu_custom_call.1} parent=11 // pred_check
          %p350 = pneg %p132
        $region26: #{tpu_custom_call.1} parent=11 // pred_check_branch
          %352 = sbr.rel (%p350) target = $region28
        $region27: #{tpu_custom_call.1} parent=11 // pred_region
          _
        $region28: #{tpu_custom_call.1} parent=11 // pred_fallthru
          _
        // Predicated region
        $region29: #{tpu_custom_call.1} parent=11 // pred_check
          %p353 = pneg %p153
        $region30: #{tpu_custom_call.1} parent=11 // pred_check_branch
          %355 = sbr.rel (%p353) target = $region32
        $region31: #{tpu_custom_call.1} parent=11 // pred_region
          _
        $region32: #{tpu_custom_call.1} parent=11 // pred_fallthru
          _
        // Predicated region
        $region33: #{tpu_custom_call.1} parent=11 // pred_check
          %p356 = pneg %p174
        $region34: #{tpu_custom_call.1} parent=11 // pred_check_branch
          %358 = sbr.rel (%p356) target = $region36
        $region35: #{tpu_custom_call.1} parent=11 // pred_region
          _
        $region36: #{tpu_custom_call.1} parent=11 // pred_fallthru
          _
        // Predicated region
        $region37: #{tpu_custom_call.1} parent=11 // pred_check
          %p359 = pneg %p195
        $region38: #{tpu_custom_call.1} parent=11 // pred_check_branch
          %361 = sbr.rel (%p359) target = $region40
        $region39: #{tpu_custom_call.1} parent=11 // pred_region
          _
        $region40: #{tpu_custom_call.1} parent=11 // pred_fallthru
          _
        // Predicated region
        $region41: #{tpu_custom_call.1} parent=11 // pred_check
          %p362 = pneg %p216
        $region42: #{tpu_custom_call.1} parent=11 // pred_check_branch
          %364 = sbr.rel (%p362) target = $region44
        $region43: #{tpu_custom_call.1} parent=11 // pred_region
          _
        $region44: #{tpu_custom_call.1} parent=11 // pred_fallthru
          _
        // Predicated region
        $region45: #{tpu_custom_call.1} parent=11 // pred_check
          %p365 = pneg %p237
        $region46: #{tpu_custom_call.1} parent=11 // pred_check_branch
          %367 = sbr.rel (%p365) target = $region48
        $region47: #{tpu_custom_call.1} parent=11 // pred_region
          _
        $region48: #{tpu_custom_call.1} parent=11 // pred_fallthru
          _
        // Predicated region
        $region49: #{tpu_custom_call.1} parent=11 // pred_check
          %p368 = pneg %p258
        $region50: #{tpu_custom_call.1} parent=11 // pred_check_branch
          %370 = sbr.rel (%p368) target = $region52
        $region51: #{tpu_custom_call.1} parent=11 // pred_region
          _
        $region52: #{tpu_custom_call.1} parent=11 // pred_fallthru
          _
        // Predicated region
        $region53: #{tpu_custom_call.1} parent=11 // pred_check
          %p371 = pneg %p279
        $region54: #{tpu_custom_call.1} parent=11 // pred_check_branch
          %373 = sbr.rel (%p371) target = $region56
        $region55: #{tpu_custom_call.1} parent=11 // pred_region
          _
        $region56: #{tpu_custom_call.1} parent=11 // pred_fallthru
          _
        // Predicated region
        $region57: #{tpu_custom_call.1} parent=11 // pred_check
          %p374 = pneg %p300
        $region58: #{tpu_custom_call.1} parent=11 // pred_check_branch
          %376 = sbr.rel (%p374) target = $region60
        $region59: #{tpu_custom_call.1} parent=11 // pred_region
          _
        $region60: #{tpu_custom_call.1} parent=11 // pred_fallthru
          _
      $region12: #{tpu_custom_call.1} parent=5 // pred_fallthru
        _
      %p377 = scmp.lt.s32.totalorder %s22, 2
      // Predicated region
      $region61: #{tpu_custom_call.1} parent=5 // pred_check
        %p378 = pneg %p377
      $region62: #{tpu_custom_call.1} parent=5 // pred_check_branch
        %380 = sbr.rel (%p378) target = $region64
      $region63: #{tpu_custom_call.1} parent=5 // pred_region
        // Predicated region
        $region65: #{tpu_custom_call.1} parent=63 // pred_check
          %p381 = pneg %p42
        $region66: #{tpu_custom_call.1} parent=63 // pred_check_branch
          %383 = sbr.rel (%p381) target = $region68
        $region67: #{tpu_custom_call.1} parent=63 // pred_region
          %s384 = smul.u32 2, %s22
          %p385 = scmp.lt.s32.totalorder %s384, 3
          %s386 = scalar_select %p385, %s384, 3
          %s387 = smul.addr %s386, 8
          %s388 = scalar_lea.vmem %s0, %s387
          %s389 = smul.u32 2, %s22
        $region68: #{tpu_custom_call.1} parent=63 // pred_fallthru
          _
      $region64: #{tpu_custom_call.1} parent=5 // pred_fallthru
        _
      %p390 = scmp.le.s32.totalorder 1, %s22
      %p391 = scmp.lt.s32.totalorder %s22, 3
      %p392 = pnand %p390, %p391
      %p393 = pneg %p392
      // Predicated region
      $region69: #{tpu_custom_call.1} parent=5 // pred_check
        _
      $region70: #{tpu_custom_call.1} parent=5 // pred_check_branch
        %395 = sbr.rel (%p392) target = $region72
      $region71: #{tpu_custom_call.1} parent=5 // pred_region
        %s396 = ssub.s32 %s22, 1
        %s397 = smul.u32 2, %s27
        %p398 = scmp.lt.s32.totalorder %s397, 3
        %s399 = scalar_select %p398, %s397, 3
        %s400 = smul.addr %s399, 8
        %s401 = scalar_lea.vmem %s0, %s400
        %p402 = pneg %p48
        %p403 = pneg %p45
        %p404 = pneg %p69
        %p405 = pneg %p66
        %p406 = pneg %p90
        %p407 = pneg %p87
        %p408 = pneg %p111
        %p409 = pneg %p108
        %p410 = pneg %p132
        %p411 = pneg %p129
        %p412 = pneg %p153
        %p413 = pneg %p150
        %p414 = pneg %p174
        %p415 = pneg %p171
        %p416 = pneg %p195
        %p417 = pneg %p192
        %p418 = pneg %p216
        %p419 = pneg %p213
        %p420 = pneg %p237
        %p421 = pneg %p234
        %p422 = pneg %p258
        %p423 = pneg %p255
        %p424 = pneg %p279
        %p425 = pneg %p276
        %p426 = pneg %p300
        %p427 = pneg %p297
        %p428 = pneg %p326
        %p429 = pneg %p323
        %s430 = sand.u32 %s313, 1
        %s431 = scalar_lea.sflag [#allocation5], %s430
        %s432 = sand.u32 %s313, 1
        %s433 = scalar_lea.vmem [#allocation4], %s432
        %s434 = smul.u32 2, %s27
        %p435 = scmp.lt.s32.totalorder %s434, 3
        %s436 = scalar_select %p435, %s434, 3
        %s437 = smul.addr %s436, 8
        %s438 = scalar_lea.vmem %s0, %s437
        %s439 = smul.u32 2, %s27
        %v441 = vld [vmem:[%s438] sm:$0xff]
        %v442 = vld [vmem:[%s438 + $0x8] sm:$0xff]
        %v443 = vld [vmem:[%s1] sm:$0xf]
        %v444 = vld [vmem:[%s2] sm:$0x1]
        %v446 = vperm.slane %v444, 0
        %vm448 = vcmask 31744
        %v450 = vsel %vm448, %v441, 0
        %v453 = vsel %vm448, %v442, 0
        %vm455 = vcmask 1043456
        %v457 = vsel %vm455, %v443, 0
        %459 = vmatpush.msra.mxu0 0.0
        %460 = vmatpush.msra.mxu0 0.0
        %461 = vmatpush.msra.mxu0 0.0
        %462 = vmatpush.msra.mxu0 0.0
        %463 = vmatpush.msra.mxu0 0.0
        %464 = vmatpush.msra.mxu0 0.0
        %465 = vmatpush.msra.mxu0 0.0
        %466 = vmatpush.msra.mxu0 0.0
        %467 = vmatpush.msra.mxu0 0.0
        %468 = vmatpush.msra.mxu0 0.0
        %469 = vmatpush.msra.mxu0 0.0
        %470 = vmatpush.msra.mxu0 0.0
        %471 = vmatpush.msra.mxu0 0.0
        %472 = vmatpush.msra.mxu0 0.0
        %473 = vmatpush.msra.mxu0 0.0
        %474 = vmatpush.msra.mxu0 %v457
        %475 = vmatmul.f32.gmra.mxu0 %v450
        %v476 = vpop.f32.mrf.mxu0
        %v477 = vadd.f32 %v446, %v476
        %478 = vmatmul.f32.gmra.mxu0 %v453
        %v479 = vpop.f32.mrf.mxu0
        %v480 = vadd.f32 %v446, %v479
        %481 = vdwg.mxu0
        %vm482 = vcmask 523264
        %483 = vst.msk [vmem:[#allocation2] sm:$0xff] %vm482, %v477
        %484 = vst.msk [vmem:[#allocation2 + $0x8] sm:$0xff] %vm482, %v480
        %vm485 = vcmask 516096
        %486 = vst.msk [vmem:[#allocation3] sm:$0x1] %vm485, 0.0
        %v487 = vld [vmem:[%s4] sm:$0x1]
        %v488 = vld [vmem:[%s9] sm:$0x1]
        %v489 = vld [vmem:[%s10] sm:$0x1]
        %v490 = vld [vmem:[%s7] sm:$0x1]
        %v491 = vld [vmem:[%s8] sm:$0x1]
        loop: start=0, step=1, limit=2
        $region73: #{tpu_custom_call.1} parent=71 // loop_pre_header
          _
        $region74: #{tpu_custom_call.1} parent=71 // loop_header
          %s493 = sphi 0, %s497
          %p494 = scmp.ge.s32.totalorder %s493, 2
        $region75: #{tpu_custom_call.1} parent=71 // loop_header_branch
          %496 = sbr.rel (%p494) target = $region79
        $region76: #{tpu_custom_call.1} parent=71 // loop_body
          %s498 = smul.u32 %s493, 8
          %s499 = sadd.s32 %s493, 1
          // While loop
          $region80: #{tpu_custom_call.1} parent=76 // loop_pre_header
            _
          $region81: #{tpu_custom_call.1} parent=76 // loop_header
            %s501 = sphi 0, %s503
            %p502 = scmp.ge.s32.totalorder %s501, %s499
            %v506 = vphi 0.0, %v578
          $region82: #{tpu_custom_call.1} parent=76 // loop_header_branch
            %505 = sbr.rel (%p502) target = $region86
          $region83: #{tpu_custom_call.1} parent=76 // loop_body
            %s507 = smul.u32 %s501, 8
            %s508 = scalar_lea.vmem [#allocation2], %s507
            %v509 = vld [vmem:[%s508] sm:$0x1]
            %s510 = ssub.s32 %s498, %s507
            %s511 = scalar_lea.vmem %s3, %s510
            %v512 = vld [vmem:[%s511] sm:$0xff]
            %v513 = vperm.slane %v509, 0
            %v514 = vmul.f32 %v513, %v512
            %s515 = sadd.s32 %s507, 1
            %s516 = scalar_lea.vmem [#allocation2], %s515
            %v517 = vld [vmem:[%s516] sm:$0x1]
            %s518 = sadd.s32 %s510, 16
            %s519 = scalar_lea.vmem %s3, %s518
            %v520 = vld [vmem:[%s519] sm:$0xff]
            %v521 = vperm.slane %v517, 0
            %v522 = vmul.f32 %v521, %v520
            %s523 = sadd.s32 %s507, 2
            %s524 = scalar_lea.vmem [#allocation2], %s523
            %v525 = vld [vmem:[%s524] sm:$0x1]
            %s526 = sadd.s32 %s510, 32
            %s527 = scalar_lea.vmem %s3, %s526
            %v528 = vld [vmem:[%s527] sm:$0xff]
            %v529 = vperm.slane %v525, 0
            %v530 = vmul.f32 %v529, %v528
            %s531 = sadd.s32 %s507, 3
            %s532 = scalar_lea.vmem [#allocation2], %s531
            %v533 = vld [vmem:[%s532] sm:$0x1]
            %s534 = sadd.s32 %s510, 48
            %s535 = scalar_lea.vmem %s3, %s534
            %v536 = vld [vmem:[%s535] sm:$0xff]
            %v537 = vperm.slane %v533, 0
            %v538 = vmul.f32 %v537, %v536
            %s539 = sadd.s32 %s507, 4
            %s540 = scalar_lea.vmem [#allocation2], %s539
            %v541 = vld [vmem:[%s540] sm:$0x1]
            %s542 = sadd.s32 %s510, 64
            %s543 = scalar_lea.vmem %s3, %s542
            %v544 = vld [vmem:[%s543] sm:$0xff]
            %v545 = vperm.slane %v541, 0
            %v546 = vmul.f32 %v545, %v544
            %s547 = sadd.s32 %s507, 5
            %s548 = scalar_lea.vmem [#allocation2], %s547
            %v549 = vld [vmem:[%s548] sm:$0x1]
            %s550 = sadd.s32 %s510, 80
            %s551 = scalar_lea.vmem %s3, %s550
            %v552 = vld [vmem:[%s551] sm:$0xff]
            %v553 = vperm.slane %v549, 0
            %v554 = vmul.f32 %v553, %v552
            %s555 = sadd.s32 %s507, 6
            %s556 = scalar_lea.vmem [#allocation2], %s555
            %v557 = vld [vmem:[%s556] sm:$0x1]
            %s558 = sadd.s32 %s510, 96
            %s559 = scalar_lea.vmem %s3, %s558
            %v560 = vld [vmem:[%s559] sm:$0xff]
            %v561 = vperm.slane %v557, 0
            %v562 = vmul.f32 %v561, %v560
            %s563 = sadd.s32 %s507, 7
            %s564 = scalar_lea.vmem [#allocation2], %s563
            %v565 = vld [vmem:[%s564] sm:$0x1]
            %s566 = sadd.s32 %s510, 112
            %s567 = scalar_lea.vmem %s3, %s566
            %v568 = vld [vmem:[%s567] sm:$0xff]
            %v569 = vperm.slane %v565, 0
            %v570 = vmul.f32 %v569, %v568
            %v571 = vadd.f32 %v514, %v522
            %v572 = vadd.f32 %v530, %v538
            %v573 = vadd.f32 %v546, %v554
            %v574 = vadd.f32 %v562, %v570
            %v575 = vadd.f32 %v571, %v572
            %v576 = vadd.f32 %v573, %v574
            %v577 = vadd.f32 %v575, %v576
            %v578 = vadd.f32 %v506, %v577
          $region84: #{tpu_custom_call.1} parent=76 // loop_footer
            %s503 = sadd.s32 %s501, 1
          $region85: #{tpu_custom_call.1} parent=76 // loop_footer_branch
            %500 = sbr.rel target = $region81
          $region86: #{tpu_custom_call.1} parent=76 // loop_exit
            _
          %s579 = scalar_lea.vmem [#allocation2], %s498
          %v580 = vld [vmem:[%s579] sm:$0xff]
          %v582 = vperm.slane %v487, 0
          %v584 = vmul.f32 %v580, %v582
          %v585 = vadd.f32 %v506, %v584
          %v586 = vmul.f32 %v585, 0.5
          %v587 = vmul.f32 %v585, 0.70710677
          %v588 = vand.u32 2147483647, %v587
          %v589 = vmul.f32 %v588, 0.3275911
          %v590 = vadd.f32 %v589, 1.0
          %v591 = vrcp.pop %v590
          %v592 = vmul.f32 %v590, %v591
          %v593 = vsub.f32 1.0, %v592
          %v594 = vmul.f32 %v591, %v593
          %v595 = vadd.f32 %v591, %v594
          %vm596 = vweird.f32 %v590
          %vm597 = vweird.f32 %v591
          %vm598 = vmor %vm596, %vm597
          %v599 = vsel %vm598, %v591, %v595
          %v600 = vand.u32 2147483647, %v590
          %vm601 = vcmp.eq.f32.partialorder %v600, 8.507059e+37
          %v602 = vand.u32 %v590, 2147483648
          %v603 = vor.u32 1.1754944e-38, %v602
          %v604 = vsel %vm601, %v603, %v599
          %v605 = vmul.f32 1.0, %v604
          %v606 = vmul.f32 %v605, 1.0614054
          %v607 = vadd.f32 %v606, -1.4531521
          %v608 = vmul.f32 %v607, %v605
          %v609 = vadd.f32 %v608, 1.4214138
          %v610 = vmul.f32 %v609, %v605
          %v611 = vadd.f32 %v610, -0.28449672
          %v612 = vmul.f32 %v611, %v605
          %v613 = vadd.f32 %v612, 0.2548296
          %v614 = vmul.f32 %v613, %v605
          %v615 = vsub.f32 0.0, %v588
          %v616 = vmul.f32 %v615, %v588
          %v617 = vmul.f32 %v616, 1.442695
          %v618 = vpow.pop %v617
          %v619 = vmul.f32 %v614, %v618
          %v620 = vsub.f32 1.0, %v619
          %vm621 = vcmp.ge.f32.partialorder %v587, 0.0
          %v622 = vsub.f32 0.0, %v620
          %v623 = vsel %vm621, %v620, %v622
          %v624 = vadd.f32 %v623, 1.0
          %v625 = vmul.f32 %v586, %v624
          %v626 = vpack.c.bf16 %v625, %v625
          %v627 = vld [vmem:[%s5] sm:$0xf]
          %v628 = vld [vmem:[%s5 + $0x4] sm:$0xf]
          %v629 = vld [vmem:[%s5 + $0x8] sm:$0xf]
          %v630 = vld [vmem:[%s5 + $0xc] sm:$0xf]
          %v631 = vld [vmem:[%s5 + $0x10] sm:$0xf]
          %v632 = vld [vmem:[%s5 + $0x14] sm:$0xf]
          %v633 = vld [vmem:[%s5 + $0x18] sm:$0xf]
          %v634 = vld [vmem:[%s5 + $0x1c] sm:$0xf]
          %v636 = vperm.slane %v490, 0
          %v646 = vunpack.c.l.b16 %v627
          %v647 = vunpack.c.l.b16 %v628
          %v648 = vunpack.c.l.b16 %v629
          %v649 = vunpack.c.l.b16 %v630
          %v650 = vunpack.c.l.b16 %v631
          %v651 = vunpack.c.l.b16 %v632
          %v652 = vunpack.c.l.b16 %v633
          %v653 = vunpack.c.l.b16 %v634
          %v654 = vpack.c.b16 %v647, %v646
          %v655 = vpack.c.b16 %v649, %v648
          %v656 = vpack.c.b16 %v651, %v650
          %v657 = vpack.c.b16 %v653, %v652
          %v663 = vsel %vm482, %v626, 0
          %665 = vmatpush.bf16.msra.mxu0 0
          %666 = vmatpush.bf16.msra.mxu0 0
          %667 = vmatpush.bf16.msra.mxu0 0
          %668 = vmatpush.bf16.msra.mxu0 0
          %669 = vmatpush.bf16.msra.mxu0 %v657
          %670 = vmatpush.bf16.msra.mxu0 %v656
          %671 = vmatpush.bf16.msra.mxu0 %v655
          %672 = vmatpush.bf16.msra.mxu0 %v654
          %673 = vmatmul.bf16.gmra.mxu0 %v663
          %v674 = vpop.f32.mrf.mxu0
          %v675 = vadd.f32 %v636, %v674
          %v676 = vpop.f32.mrf.mxu0
          %677 = vdwg.mxu0
          %v678 = vld [vmem:[%s6] sm:$0xf]
          %v679 = vld [vmem:[%s6 + $0x4] sm:$0xf]
          %v680 = vld [vmem:[%s6 + $0x8] sm:$0xf]
          %v681 = vld [vmem:[%s6 + $0xc] sm:$0xf]
          %v682 = vld [vmem:[%s6 + $0x10] sm:$0xf]
          %v683 = vld [vmem:[%s6 + $0x14] sm:$0xf]
          %v684 = vld [vmem:[%s6 + $0x18] sm:$0xf]
          %v685 = vld [vmem:[%s6 + $0x1c] sm:$0xf]
          %v687 = vperm.slane %v491, 0
          %v697 = vunpack.c.l.b16 %v678
          %v698 = vunpack.c.l.b16 %v679
          %v699 = vunpack.c.l.b16 %v680
          %v700 = vunpack.c.l.b16 %v681
          %v701 = vunpack.c.l.b16 %v682
          %v702 = vunpack.c.l.b16 %v683
          %v703 = vunpack.c.l.b16 %v684
          %v704 = vunpack.c.l.b16 %v685
          %v705 = vpack.c.b16 %v698, %v697
          %v706 = vpack.c.b16 %v700, %v699
          %v707 = vpack.c.b16 %v702, %v701
          %v708 = vpack.c.b16 %v704, %v703
          %713 = vmatpush.bf16.msra.mxu0 0
          %714 = vmatpush.bf16.msra.mxu0 0
          %715 = vmatpush.bf16.msra.mxu0 0
          %716 = vmatpush.bf16.msra.mxu0 0
          %717 = vmatpush.bf16.msra.mxu0 %v708
          %718 = vmatpush.bf16.msra.mxu0 %v707
          %719 = vmatpush.bf16.msra.mxu0 %v706
          %720 = vmatpush.bf16.msra.mxu0 %v705
          %721 = vmatmul.bf16.gmra.mxu0 %v663
          %v722 = vpop.f32.mrf.mxu0
          %v723 = vadd.f32 %v687, %v722
          %v724 = vpop.f32.mrf.mxu0
          %725 = vdwg.mxu0
          %v726 = vxor.u32 %v723, 2147483648
          %v727 = vmul.f32 %v726, 1.442695
          %v728 = vpow.pop %v727
          %v729 = vadd.f32 %v728, 1.0
          %v730 = vrcp.pop %v729
          %v731 = vmul.f32 %v729, %v730
          %v732 = vsub.f32 1.0, %v731
          %v733 = vmul.f32 %v730, %v732
          %v734 = vadd.f32 %v730, %v733
          %vm735 = vweird.f32 %v729
          %vm736 = vweird.f32 %v730
          %vm737 = vmor %vm735, %vm736
          %v738 = vsel %vm737, %v730, %v734
          %v739 = vand.u32 2147483647, %v729
          %vm740 = vcmp.eq.f32.partialorder %v739, 8.507059e+37
          %v741 = vand.u32 %v729, 2147483648
          %v742 = vor.u32 1.1754944e-38, %v741
          %v743 = vsel %vm740, %v742, %v738
          %v744 = vmul.f32 1.0, %v743
          %v745 = vmul.f32 %v675, %v744
          %v746 = vadd.f32 %v745, %v580
          %v747 = vsel %vm482, %v746, 0.0
          %748 = vadd.xlane.f32.xlu0 %v747
          %v749 = vpop.xlane.xlu0 %748
          %v750 = vrcp.pop 64.0
          %v751 = vmul.f32 64.0, %v750
          %v752 = vsub.f32 1.0, %v751
          %v753 = vmul.f32 %v750, %v752
          %v754 = vadd.f32 %v750, %v753
          %vm755 = vweird.f32 %v750
          %v756 = vsel %vm755, %v750, %v754
          %v757 = vmul.f32 %v749, %v756
          %v758 = vsub.f32 %v746, %v757
          %v759 = vmul.f32 %v758, %v758
          %v760 = vsel %vm482, %v759, 0.0
          %761 = vadd.xlane.f32.xlu0 %v760
          %v762 = vpop.xlane.xlu0 %761
          %v763 = vmul.f32 %v762, %v756
          %v764 = vadd.f32 %v763, 1e-05
          %v765 = vrsqrt.pop %v764
          %v766 = vmul.f32 %v765, %v764
          %v767 = vmul.f32 %v766, %v765
          %v768 = vmul.f32 0.5, %v767
          %v769 = vsub.f32 1.5, %v768
          %v770 = vmul.f32 %v765, %v769
          %vm771 = vweird.f32 %v764
          %vm772 = vweird.f32 %v765
          %vm773 = vmor %vm771, %vm772
          %v774 = vsel %vm773, %v765, %v770
          %v775 = vmul.f32 %v758, %v774
          %v777 = vperm.slane %v488, 0
          %v779 = vmul.f32 %v775, %v777
          %v781 = vperm.slane %v489, 0
          %v783 = vadd.f32 %v779, %v781
          %v784 = vld [vmem:[#allocation3] sm:$0x1]
          %v785 = vsel %vm482, %v783, 0.0
          %v786 = vrot.slane %v785, 4
          %v787 = vadd.f32 %v785, %v786
          %v788 = vrot.slane %v787, 2
          %v789 = vadd.f32 %v787, %v788
          %v790 = vrot.slane %v789, 1
          %v791 = vadd.f32 %v789, %v790
          %v792 = vadd.f32 %v784, %v791
          %793 = vst.msk [vmem:[#allocation3] sm:$0x1] %vm485, %v792
        $region77: #{tpu_custom_call.1} parent=71 // loop_footer
          %s497 = sadd.s32 1, %s493
        $region78: #{tpu_custom_call.1} parent=71 // loop_footer_branch
          %492 = sbr.rel target = $region74
        $region79: #{tpu_custom_call.1} parent=71 // loop_exit
          _
        %v794 = vld [vmem:[#allocation3] sm:$0x1]
        %v795 = vmul.f32 %v794, 0.0625
        %v796 = vld [vmem:[%s11] sm:$0xff]
        %v797 = vld [vmem:[%s11 + $0x8] sm:$0xff]
        %v798 = vld [vmem:[%s11 + $0x10] sm:$0xff]
        %v799 = vld [vmem:[%s11 + $0x18] sm:$0xff]
        %v800 = vld [vmem:[%s11 + $0x20] sm:$0xff]
        %v801 = vld [vmem:[%s11 + $0x28] sm:$0xff]
        %v802 = vld [vmem:[%s11 + $0x30] sm:$0xff]
        %v803 = vld [vmem:[%s11 + $0x38] sm:$0xff]
        %v804 = vld [vmem:[%s12] sm:$0x1]
        %v806 = vsel %vm482, %v795, 0
        %808 = vmatpush.msra.mxu0 0.0
        %809 = vmatpush.msra.mxu0 0.0
        %810 = vmatpush.msra.mxu0 0.0
        %811 = vmatpush.msra.mxu0 0.0
        %812 = vmatpush.msra.mxu0 0.0
        %813 = vmatpush.msra.mxu0 0.0
        %814 = vmatpush.msra.mxu0 0.0
        %815 = vmatpush.msra.mxu0 0.0
        %816 = vmatpush.msra.mxu0 %v803
        %817 = vmatpush.msra.mxu0 %v802
        %818 = vmatpush.msra.mxu0 %v801
        %819 = vmatpush.msra.mxu0 %v800
        %820 = vmatpush.msra.mxu0 %v799
        %821 = vmatpush.msra.mxu0 %v798
        %822 = vmatpush.msra.mxu0 %v797
        %823 = vmatpush.msra.mxu0 %v796
        %824 = vmatmul.f32.gmra.mxu0 %v806
        %v825 = vpop.f32.mrf.mxu0
        %v826 = vadd.f32 %v804, %v825
        %827 = vdwg.mxu0
        %vm828 = vcmask 1040384
        %v829 = vsel %vm828, %v826, -inf
        %830 = vmax.xlane.f32.xlu0 %v829
        %v831 = vpop.xlane.xlu0 %830
        %v832 = vsub.f32 %v826, %v831
        %v833 = vmul.f32 %v832, 1.442695
        %v834 = vpow.pop %v833
        %v835 = vsel %vm828, %v834, 0.0
        %836 = vadd.xlane.f32.xlu0 %v835
        %v837 = vpop.xlane.xlu0 %836
        %v838 = vrcp.pop %v837
        %v839 = vmul.f32 %v837, %v838
        %v840 = vsub.f32 1.0, %v839
        %v841 = vmul.f32 %v838, %v840
        %v842 = vadd.f32 %v838, %v841
        %vm843 = vweird.f32 %v837
        %vm844 = vweird.f32 %v838
        %vm845 = vmor %vm843, %vm844
        %v846 = vsel %vm845, %v838, %v842
        %v847 = vand.u32 2147483647, %v837
        %vm848 = vcmp.eq.f32.partialorder %v847, 8.507059e+37
        %v849 = vand.u32 %v837, 2147483648
        %v850 = vor.u32 1.1754944e-38, %v849
        %v851 = vsel %vm848, %v850, %v846
        %v852 = vmul.f32 %v834, %v851
        %853 = vst [vmem:[%s433] sm:$0x1] %v852
        %s854 = sand.u32 %s313, 1
        %s855 = scalar_lea.sflag [#allocation5], %s854
        %s856 = sand.u32 %s313, 1
        %s857 = scalar_lea.vmem [#allocation4], %s856
        // Predicated region
        $region87: #{tpu_custom_call.1} parent=71 // pred_check
          %p858 = pneg %p323
        $region88: #{tpu_custom_call.1} parent=71 // pred_check_branch
          %860 = sbr.rel (%p858) target = $region90
        $region89: #{tpu_custom_call.1} parent=71 // pred_region
          %862 = vsyncadd %s855, 0
          %s863 = scalar_lea.hbm %s13, %s27
          %s865 = sshll.u32 %s857, 4
          %s866 = int_to_ptr.vmem [resolvable:$true] %s865
          %s867 = sshll.u32 %s863, 4
          %s868 = int_to_ptr.hbm [resolvable:$true] %s867
          %870 = dma.vmem_to_hbm [thread:$0]  %s866, 16, %s868, %s855
        $region90: #{tpu_custom_call.1} parent=71 // pred_fallthru
          _
      $region72: #{tpu_custom_call.1} parent=5 // pred_fallthru
        _
      %p871 = scmp.le.s32.totalorder 2, %s22
      // Predicated region
      $region91: #{tpu_custom_call.1} parent=5 // pred_check
        %p872 = pneg %p871
      $region92: #{tpu_custom_call.1} parent=5 // pred_check_branch
        %874 = sbr.rel (%p872) target = $region94
      $region93: #{tpu_custom_call.1} parent=5 // pred_region
        %s875 = ssub.s32 %s22, 2
        // Predicated region
        $region95: #{tpu_custom_call.1} parent=93 // pred_check
          %p876 = pneg %p329
        $region96: #{tpu_custom_call.1} parent=93 // pred_check_branch
          %878 = sbr.rel (%p876) target = $region98
        $region97: #{tpu_custom_call.1} parent=93 // pred_region
          %s879 = sand.u32 %s314, 1
          %s880 = scalar_lea.sflag [#allocation5], %s879
          %s881 = sand.u32 %s314, 1
          %s882 = scalar_lea.vmem [#allocation4], %s881
          %884 = dma.done %s880, 16
        $region98: #{tpu_custom_call.1} parent=93 // pred_fallthru
          _
      $region94: #{tpu_custom_call.1} parent=5 // pred_fallthru
        _
    $region6: #{tpu_custom_call.1} parent=1 // loop_footer
      %s26 = sadd.s32 1, %s22
    $region7: #{tpu_custom_call.1} parent=1 // loop_footer_branch
      %21 = sbr.rel target = $region3
    $region8: #{tpu_custom_call.1} parent=1 // loop_exit
      _
    %885 = vsyncpa [#allocation5], 1
    %s886 = scalar_lea.sflag [#allocation5], 1
    %887 = vsyncpa %s886, 1

</llo_original>
